<compile_context>
chip_gen: v5e
topology: v5e:2x2
jax: 0.10.0
libtpu: 0.0.40
codegen_flags: <defaults>
</compile_context>

<pallas_src>
import functools

import jax
import jax.numpy as jnp
from jax.experimental import pallas as pl
from jax.experimental.pallas import tpu as pltpu

IN_DIM = 28 * 28   # 784
H1 = 512
H2 = 256
OUT = 1


def _disc_kernel(x_ref, w1_ref, b1_ref, w2_ref, b2_ref, w3_ref, b3_ref, o_ref):
    # x:  (TB, 784) f32 (raw activations)      w1: (784, 512) compute dtype
    # b1: (1, 512) f32                         w2: (512, 256) compute dtype
    # b2: (1, 256) f32                         w3: (1, 256) f32   b3: (1, 1) f32
    x = x_ref[...].astype(w1_ref.dtype)        # cast in-kernel (no extra HBM pass)

    # Linear 1 + LeakyReLU(0.2) — MXU matmul, f32 accumulation.
    h1 = jnp.dot(x, w1_ref[...], preferred_element_type=jnp.float32) + b1_ref[...]
    h1 = jnp.where(h1 > 0, h1, 0.2 * h1)

    # Linear 2 + LeakyReLU(0.2)
    h1 = h1.astype(w2_ref.dtype)
    h2 = jnp.dot(h1, w2_ref[...], preferred_element_type=jnp.float32) + b2_ref[...]
    h2 = jnp.where(h2 > 0, h2, 0.2 * h2)

    # Linear 3 (N=1): VPU multiply + cross-lane reduction (rides the XLU slot)
    # instead of a 1-wide MXU matmul.
    z = jnp.sum(h2 * w3_ref[...], axis=-1, keepdims=True) + b3_ref[...]

    # Sigmoid (exp on the EUP slot).
    o_ref[...] = (1.0 / (1.0 + jnp.exp(-z))).astype(o_ref.dtype)


def _round_up(n, m):
    return ((n + m - 1) // m) * m


def _choose_tile_b(batch, tile_b):
    # Shrink the tile for tiny batches (sublane-aligned), keep it a multiple of 8.
    t = min(tile_b, _round_up(batch, 8))
    # v7x megacore: batches big enough to split should produce >= 2 grid steps so
    # the "parallel" axis shards across both TensorCores (keep per-core tiles >= 256).
    if batch >= 512 and pl.cdiv(batch, t) < 2:
        t = _round_up(pl.cdiv(batch, 2), 8)
    return int(t)


def prepare_params(params, compute_dtype=jnp.bfloat16):
    """One-time weight prep (cast + reshape) — hoisted out of the forward pass."""
    w1, b1, w2, b2, w3, b3 = params
    return (
        w1.astype(compute_dtype),                    # (784, 512)
        b1.reshape(1, H1).astype(jnp.float32),       # (1, 512)
        w2.astype(compute_dtype),                    # (512, 256)
        b2.reshape(1, H2).astype(jnp.float32),       # (1, 256)
        w3.reshape(OUT, H2).astype(jnp.float32),     # (1, 256) — row vector for VPU head
        b3.reshape(1, OUT).astype(jnp.float32),      # (1, 1)
    )


@functools.partial(jax.jit, static_argnames=("tile_b",))
def discriminator_forward(x_nchw, prepared, *, tile_b=1024):
    """x_nchw: (B, 1, 28, 28) float32 -> (B, 1) float32 probabilities."""
    w1_c, b1_f, w2_c, b2_f, w3_row, b3_f = prepared
    B = x_nchw.shape[0]

    # torch x.view(-1, 784): free reshape, no pad, no cast — kernel reads raw f32.
    x = x_nchw.reshape(B, IN_DIM)

    eff_tile = _choose_tile_b(B, tile_b)
    grid = (pl.cdiv(B, eff_tile),)   # ragged last tile handled by masked partial store

    # Grid-invariant weights/biases: resident in VMEM across batch tiles and
    # single-buffered (no point double-buffering blocks that never change).
    def const(shape):
        return pl.BlockSpec(shape, lambda i: (0, 0),
                            pipeline_mode=pl.Buffered(buffer_count=1))

    out = pl.pallas_call(
        _disc_kernel,
        out_shape=jax.ShapeDtypeStruct((B, OUT), jnp.float32),
        grid_spec=pltpu.PrefetchScalarGridSpec(
            num_scalar_prefetch=0,
            grid=grid,
            in_specs=[
                pl.BlockSpec((eff_tile, IN_DIM), lambda i: (i, 0)),  # x tile (raw f32)
                const((IN_DIM, H1)), const((1, H1)),
                const((H1, H2)),     const((1, H2)),
                const((OUT, H2)),    const((1, OUT)),
            ],
            out_specs=pl.BlockSpec((eff_tile, OUT), lambda i: (i, 0)),
        ),
        compiler_params=pltpu.CompilerParams(
            dimension_semantics=("parallel",),
            vmem_limit_bytes=32 * 1024 * 1024,
        ),
    )(x, w1_c, b1_f, w2_c, b2_f, w3_row, b3_f)

    return out


def init_params(key):
    """Deterministic PyTorch-style Linear init: U(-1/sqrt(fan_in), 1/sqrt(fan_in))."""
    ks = jax.random.split(key, 6)

    def lin(kw, kb, fan_in, fan_out):
        bound = 1.0 / (fan_in ** 0.5)
        w = jax.random.uniform(kw, (fan_in, fan_out), jnp.float32, -bound, bound)
        b = jax.random.uniform(kb, (1, fan_out), jnp.float32, -bound, bound)
        return w, b

    w1, b1 = lin(ks[0], ks[1], IN_DIM, H1)
    w2, b2 = lin(ks[2], ks[3], H1, H2)
    w3, b3 = lin(ks[4], ks[5], H2, OUT)
    return (w1, b1, w2, b2, w3, b3)


def _reference_forward(x_nchw, params):
    w1, b1, w2, b2, w3, b3 = params
    x = x_nchw.reshape(x_nchw.shape[0], IN_DIM)
    h = x @ w1 + b1
    h = jnp.where(h > 0, h, 0.2 * h)
    h = h @ w2 + b2
    h = jnp.where(h > 0, h, 0.2 * h)
    z = h @ w3 + b3
    return jax.nn.sigmoid(z)


if __name__ == "__main__":
    key = jax.random.PRNGKey(0)
    k_param, k_x = jax.random.split(key)

    params = init_params(k_param)
    # Small MNIST-like batch, NCHW like PyTorch.
    x = jax.random.normal(k_x, (8, 1, 28, 28), jnp.float32)

    ref = _reference_forward(x, params)

    # Full-f32 path: tight check of the kernel structure.
    prep_f32 = prepare_params(params, compute_dtype=jnp.float32)
    out_f32 = jax.block_until_ready(discriminator_forward(x, prep_f32))
    assert out_f32.shape == (8, 1)
    assert jnp.allclose(out_f32, ref, atol=1e-4, rtol=1e-4), "f32 Pallas output mismatch"

    # Default mixed-precision path (bf16 MXU inputs, f32 accumulation).
    prep_bf16 = prepare_params(params, compute_dtype=jnp.bfloat16)
    out_bf16 = jax.block_until_ready(discriminator_forward(x, prep_bf16))
    assert out_bf16.shape == (8, 1)
    assert jnp.allclose(out_bf16, ref, atol=5e-2, rtol=5e-2), "bf16 Pallas output mismatch"

    print("KERNEL_OK")
</pallas_src>

<mosaic_0001>
module attributes {stable_mosaic.version = 11 : i64} {
  func.func @_disc_kernel(%arg0: i32, %arg1: memref<8x784xf32, #tpu.memory_space<vmem>>, %arg2: memref<784x512xf32, #tpu.memory_space<vmem>>, %arg3: memref<1x512xf32, #tpu.memory_space<vmem>>, %arg4: memref<512x256xf32, #tpu.memory_space<vmem>>, %arg5: memref<1x256xf32, #tpu.memory_space<vmem>>, %arg6: memref<1x256xf32, #tpu.memory_space<vmem>>, %arg7: memref<1x1xf32, #tpu.memory_space<vmem>>, %arg8: memref<8x1xf32, #tpu.memory_space<vmem>>) attributes {dimension_semantics = [#tpu.dimension_semantics<parallel>], iteration_bounds = array<i64: 1>, scalar_prefetch = 0 : i64, scratch_operands = 0 : i64, tpu.core_type = #tpu.core_type<tc>, window_params = [{transform_indices = @transform_0, window_bounds = array<i64: 8, 784>}, {pipeline_mode = #tpu.pipeline_mode<synchronous>, transform_indices = @transform_1, window_bounds = array<i64: 784, 512>}, {pipeline_mode = #tpu.pipeline_mode<synchronous>, transform_indices = @transform_2, window_bounds = array<i64: 1, 512>}, {pipeline_mode = #tpu.pipeline_mode<synchronous>, transform_indices = @transform_3, window_bounds = array<i64: 512, 256>}, {pipeline_mode = #tpu.pipeline_mode<synchronous>, transform_indices = @transform_4, window_bounds = array<i64: 1, 256>}, {pipeline_mode = #tpu.pipeline_mode<synchronous>, transform_indices = @transform_5, window_bounds = array<i64: 1, 256>}, {pipeline_mode = #tpu.pipeline_mode<synchronous>, transform_indices = @transform_6, window_bounds = array<i64: 1, 1>}, {transform_indices = @transform_7, window_bounds = array<i64: 8, 1>}]} {
    %c0 = arith.constant 0 : index
    %c0_0 = arith.constant 0 : index
    %0 = vector.load %arg1[%c0, %c0_0] : memref<8x784xf32, #tpu.memory_space<vmem>>, vector<8x784xf32>
    %c0_1 = arith.constant 0 : index
    %c0_2 = arith.constant 0 : index
    %1 = vector.load %arg2[%c0_1, %c0_2] : memref<784x512xf32, #tpu.memory_space<vmem>>, vector<784x512xf32>
    %cst = arith.constant dense<0.000000e+00> : vector<8x512xf32>
    %2 = tpu.matmul %0, %1, %cst {dimension_numbers = #tpu.dot_dimension_numbers<[1], [0], [0], [1], [0, 0, 1, 1], [], []>} : vector<8x784xf32>, vector<784x512xf32>, vector<8x512xf32> -> vector<8x512xf32>
    %c0_3 = arith.constant 0 : index
    %c0_4 = arith.constant 0 : index
    %3 = vector.load %arg3[%c0_3, %c0_4] : memref<1x512xf32, #tpu.memory_space<vmem>>, vector<1x512xf32>
    %4 = vector.broadcast %3 : vector<1x512xf32> to vector<8x512xf32>
    %5 = arith.addf %2, %4 : vector<8x512xf32>
    %cst_5 = arith.constant 0.000000e+00 : f32
    %6 = vector.broadcast %cst_5 : f32 to vector<8x512xf32>
    %7 = arith.cmpf ogt, %5, %6 : vector<8x512xf32>
    %cst_6 = arith.constant 2.000000e-01 : f32
    %8 = vector.broadcast %cst_6 : f32 to vector<8x512xf32>
    %9 = arith.mulf %8, %5 : vector<8x512xf32>
    %10 = arith.select %7, %5, %9 : vector<8x512xi1>, vector<8x512xf32>
    %c0_7 = arith.constant 0 : index
    %c0_8 = arith.constant 0 : index
    %11 = vector.load %arg4[%c0_7, %c0_8] : memref<512x256xf32, #tpu.memory_space<vmem>>, vector<512x256xf32>
    %cst_9 = arith.constant dense<0.000000e+00> : vector<8x256xf32>
    %12 = tpu.matmul %10, %11, %cst_9 {dimension_numbers = #tpu.dot_dimension_numbers<[1], [0], [0], [1], [0, 0, 1, 1], [], []>} : vector<8x512xf32>, vector<512x256xf32>, vector<8x256xf32> -> vector<8x256xf32>
    %c0_10 = arith.constant 0 : index
    %c0_11 = arith.constant 0 : index
    %13 = vector.load %arg5[%c0_10, %c0_11] : memref<1x256xf32, #tpu.memory_space<vmem>>, vector<1x256xf32>
    %14 = vector.broadcast %13 : vector<1x256xf32> to vector<8x256xf32>
    %15 = arith.addf %12, %14 : vector<8x256xf32>
    %cst_12 = arith.constant 0.000000e+00 : f32
    %16 = vector.broadcast %cst_12 : f32 to vector<8x256xf32>
    %17 = arith.cmpf ogt, %15, %16 : vector<8x256xf32>
    %cst_13 = arith.constant 2.000000e-01 : f32
    %18 = vector.broadcast %cst_13 : f32 to vector<8x256xf32>
    %19 = arith.mulf %18, %15 : vector<8x256xf32>
    %20 = arith.select %17, %15, %19 : vector<8x256xi1>, vector<8x256xf32>
    %c0_14 = arith.constant 0 : index
    %c0_15 = arith.constant 0 : index
    %21 = vector.load %arg6[%c0_14, %c0_15] : memref<1x256xf32, #tpu.memory_space<vmem>>, vector<1x256xf32>
    %22 = vector.broadcast %21 : vector<1x256xf32> to vector<8x256xf32>
    %23 = arith.mulf %20, %22 : vector<8x256xf32>
    %cst_16 = arith.constant dense<0.000000e+00> : vector<8xf32>
    %24 = vector.multi_reduction <add>, %23, %cst_16 [1] : vector<8x256xf32> to vector<8xf32>
    %25 = vector.shape_cast %24 : vector<8xf32> to vector<8x1xf32>
    %c0_17 = arith.constant 0 : index
    %c0_18 = arith.constant 0 : index
    %26 = vector.load %arg7[%c0_17, %c0_18] : memref<1x1xf32, #tpu.memory_space<vmem>>, vector<1x1xf32>
    %27 = vector.broadcast %26 : vector<1x1xf32> to vector<8x1xf32>
    %28 = arith.addf %25, %27 : vector<8x1xf32>
    %cst_19 = arith.constant 0.000000e+00 : f32
    %29 = vector.broadcast %cst_19 : f32 to vector<8x1xf32>
    %30 = arith.subf %29, %28 : vector<8x1xf32>
    %31 = math.exp %30 : vector<8x1xf32>
    %cst_20 = arith.constant 1.000000e+00 : f32
    %32 = vector.broadcast %cst_20 : f32 to vector<8x1xf32>
    %33 = arith.addf %32, %31 : vector<8x1xf32>
    %cst_21 = arith.constant 1.000000e+00 : f32
    %34 = vector.broadcast %cst_21 : f32 to vector<8x1xf32>
    %35 = arith.divf %34, %33 : vector<8x1xf32>
    %c0_22 = arith.constant 0 : index
    %c0_23 = arith.constant 0 : index
    %36 = vector.load %arg8[%c0_22, %c0_23] : memref<8x1xf32, #tpu.memory_space<vmem>>, vector<8x1xf32>
    tpu.vector_store %arg8[%c0_22, %c0_23], %35 {strides = array<i32>} : memref<8x1xf32, #tpu.memory_space<vmem>>, vector<8x1xf32>,
    return
  }
  func.func @transform_0(%arg0: i32) -> (i32, i32) {
    %c0_i32 = arith.constant 0 : i32
    %c0_i32_0 = arith.constant 0 : i32
    return %arg0, %c0_i32 : i32, i32
  }
  func.func @transform_1(%arg0: i32) -> (i32, i32) {
    %c0_i32 = arith.constant 0 : i32
    %c0_i32_0 = arith.constant 0 : i32
    %c0_i32_1 = arith.constant 0 : i32
    return %c0_i32, %c0_i32_0 : i32, i32
  }
  func.func @transform_2(%arg0: i32) -> (i32, i32) {
    %c0_i32 = arith.constant 0 : i32
    %c0_i32_0 = arith.constant 0 : i32
    %c0_i32_1 = arith.constant 0 : i32
    return %c0_i32, %c0_i32_0 : i32, i32
  }
  func.func @transform_3(%arg0: i32) -> (i32, i32) {
    %c0_i32 = arith.constant 0 : i32
    %c0_i32_0 = arith.constant 0 : i32
    %c0_i32_1 = arith.constant 0 : i32
    return %c0_i32, %c0_i32_0 : i32, i32
  }
  func.func @transform_4(%arg0: i32) -> (i32, i32) {
    %c0_i32 = arith.constant 0 : i32
    %c0_i32_0 = arith.constant 0 : i32
    %c0_i32_1 = arith.constant 0 : i32
    return %c0_i32, %c0_i32_0 : i32, i32
  }
  func.func @transform_5(%arg0: i32) -> (i32, i32) {
    %c0_i32 = arith.constant 0 : i32
    %c0_i32_0 = arith.constant 0 : i32
    %c0_i32_1 = arith.constant 0 : i32
    return %c0_i32, %c0_i32_0 : i32, i32
  }
  func.func @transform_6(%arg0: i32) -> (i32, i32) {
    %c0_i32 = arith.constant 0 : i32
    %c0_i32_0 = arith.constant 0 : i32
    %c0_i32_1 = arith.constant 0 : i32
    return %c0_i32, %c0_i32_0 : i32, i32
  }
  func.func @transform_7(%arg0: i32) -> (i32, i32) {
    %c0_i32 = arith.constant 0 : i32
    %c0_i32_0 = arith.constant 0 : i32
    return %arg0, %c0_i32 : i32, i32
  }
}

</mosaic_0001>

<llo_original>
// kernel: discriminator_forward.1
$region0: #{discriminator_forward.1}
  #allocation0 [shape = 'u32[]', space=smem, size = 0x4, offset = 0x4, fixed_abs, tag = 'smem constant byte address 0x4 - core index']
  #allocation1 [shape = 'u32[72,128]{1,0:T(1,128)}', space=vmem, size = 0x9000, scoped, tag = 'internal scratch']
  #allocation2 [shape = 'f32[1,1]{1,0:T(1,128)S(1)}', space=vmem, size = 0x200, scoped, tag = 'scoped memory for discriminator_forward.1']
  %s0 = inlined_call_operand.vmem [shape: f32[8,784], index: 0, kind: input, shape index: {}]
  %s1 = inlined_call_operand.hbm [shape: f32[784,512], index: 1, kind: input, shape index: {}]
  %s2 = inlined_call_operand.hbm [shape: f32[1,512], index: 2, kind: input, shape index: {}]
  %s3 = inlined_call_operand.hbm [shape: f32[512,256], index: 3, kind: input, shape index: {}]
  %s4 = inlined_call_operand.hbm [shape: f32[1,256], index: 4, kind: input, shape index: {}]
  %s5 = inlined_call_operand.hbm [shape: f32[1,256], index: 5, kind: input, shape index: {}]
  %s6 = inlined_call_operand.<no memory space> [shape: f32[1,1], index: 6, kind: input, shape index: {}]
  %s7 = inlined_call_operand.vmem [shape: f32[8,1], index: 7, kind: output, shape index: {}]
  %s8 = sld [smem:[#allocation0]]
  $region58: #{discriminator_forward.1} parent=0
    _
  %s10 = ssub.s32 1, %s8
  %s11 = scalar_select 0, %s10, %s8
  %v12 = vstv %s6
  %13 = vst [vmem:[#allocation2] sm:$0x1] %v12
  $region1: #{discriminator_forward.1} parent=0
    #allocation3 [shape = 'u8[1605632]{0}', space=vmem, size = 0x188000, scoped, tag = 'input window, operand 1, single buffered']
    #allocation4 [shape = 's32[1]{0}', space=sflag, size = 0x4, scoped, tag = 'scoped memory for discriminator_forward.1']
    #allocation5 [shape = 'u8[2048]{0}', space=vmem, size = 0x800, scoped, tag = 'input window, operand 2, single buffered']
    #allocation6 [shape = 's32[1]{0}', space=sflag, size = 0x4, scoped, tag = 'scoped memory for discriminator_forward.1']
    #allocation7 [shape = 'u8[524288]{0}', space=vmem, size = 0x80000, scoped, tag = 'input window, operand 3, single buffered']
    #allocation8 [shape = 'u8[1024]{0}', space=vmem, size = 0x400, scoped, tag = 'input window, operand 4, single buffered']
    #allocation9 [shape = 's32[1]{0}', space=sflag, size = 0x4, scoped, tag = 'scoped memory for discriminator_forward.1']
    #allocation10 [shape = 'u8[1024]{0}', space=vmem, size = 0x400, scoped, tag = 'input window, operand 5, single buffered']
    %14 = vsyncpa [#allocation4], 0
    %15 = vsyncpa [#allocation6], 0
    %16 = vsyncpa [#allocation9], 0
    // Predicated region
    $region2: #{discriminator_forward.1} parent=1 // pred_check
      _
    $region3: #{discriminator_forward.1} parent=1 // pred_check_branch
      %18 = sbr.rel (0) target = $region5
    $region4: #{discriminator_forward.1} parent=1 // pred_region
      _
    $region5: #{discriminator_forward.1} parent=1 // pred_fallthru
      _
    // Predicated region
    $region6: #{discriminator_forward.1} parent=1 // pred_check
      _
    $region7: #{discriminator_forward.1} parent=1 // pred_check_branch
      %20 = sbr.rel (0) target = $region9
    $region8: #{discriminator_forward.1} parent=1 // pred_region
      %22 = vsyncadd [#allocation4], 0
      %s23 = sshll.u32 %s1, 4
      %s24 = int_to_ptr.hbm [resolvable:$true] %s23
      %s25 = sshll.u32 [#allocation3], 4
      %s26 = int_to_ptr.vmem [resolvable:$true] %s25
      %31 = dma.hbm_to_vmem [thread:$0]  %s24, 50176, %s26, [#allocation4], 512, 512, 32
    $region9: #{discriminator_forward.1} parent=1 // pred_fallthru
      _
    // Predicated region
    $region10: #{discriminator_forward.1} parent=1 // pred_check
      _
    $region11: #{discriminator_forward.1} parent=1 // pred_check_branch
      %33 = sbr.rel (0) target = $region13
    $region12: #{discriminator_forward.1} parent=1 // pred_region
      %35 = vsyncadd [#allocation6], 0
      %s37 = sshll.u32 %s2, 4
      %s38 = int_to_ptr.hbm [resolvable:$true] %s37
      %s39 = sshll.u32 [#allocation5], 4
      %s40 = int_to_ptr.vmem [resolvable:$true] %s39
      %42 = dma.hbm_to_vmem [thread:$0]  %s38, 64, %s40, [#allocation6]
    $region13: #{discriminator_forward.1} parent=1 // pred_fallthru
      _
    // Predicated region
    $region14: #{discriminator_forward.1} parent=1 // pred_check
      _
    $region15: #{discriminator_forward.1} parent=1 // pred_check_branch
      %44 = sbr.rel (0) target = $region17
    $region16: #{discriminator_forward.1} parent=1 // pred_region
      %46 = vsyncadd [#allocation6], 0
      %s47 = sshll.u32 %s3, 4
      %s48 = int_to_ptr.hbm [resolvable:$true] %s47
      %s49 = sshll.u32 [#allocation7], 4
      %s50 = int_to_ptr.vmem [resolvable:$true] %s49
      %55 = dma.hbm_to_vmem [thread:$0]  %s48, 16384, %s50, [#allocation6], 256, 256, 16
    $region17: #{discriminator_forward.1} parent=1 // pred_fallthru
      _
    // Predicated region
    $region18: #{discriminator_forward.1} parent=1 // pred_check
      _
    $region19: #{discriminator_forward.1} parent=1 // pred_check_branch
      %57 = sbr.rel (0) target = $region21
    $region20: #{discriminator_forward.1} parent=1 // pred_region
      %59 = vsyncadd [#allocation9], 0
      %s61 = sshll.u32 %s4, 4
      %s62 = int_to_ptr.hbm [resolvable:$true] %s61
      %s63 = sshll.u32 [#allocation8], 4
      %s64 = int_to_ptr.vmem [resolvable:$true] %s63
      %66 = dma.hbm_to_vmem [thread:$0]  %s62, 32, %s64, [#allocation9]
    $region21: #{discriminator_forward.1} parent=1 // pred_fallthru
      _
    // Predicated region
    $region22: #{discriminator_forward.1} parent=1 // pred_check
      _
    $region23: #{discriminator_forward.1} parent=1 // pred_check_branch
      %68 = sbr.rel (0) target = $region25
    $region24: #{discriminator_forward.1} parent=1 // pred_region
      %70 = vsyncadd [#allocation9], 0
      %s72 = sshll.u32 %s5, 4
      %s73 = int_to_ptr.hbm [resolvable:$true] %s72
      %s74 = sshll.u32 [#allocation10], 4
      %s75 = int_to_ptr.vmem [resolvable:$true] %s74
      %77 = dma.hbm_to_vmem [thread:$0]  %s73, 32, %s75, [#allocation9]
    $region25: #{discriminator_forward.1} parent=1 // pred_fallthru
      _
    // Predicated region
    $region26: #{discriminator_forward.1} parent=1 // pred_check
      _
    $region27: #{discriminator_forward.1} parent=1 // pred_check_branch
      %79 = sbr.rel (0) target = $region29
    $region28: #{discriminator_forward.1} parent=1 // pred_region
      _
    $region29: #{discriminator_forward.1} parent=1 // pred_fallthru
      _
    // Predicated region
    $region30: #{discriminator_forward.1} parent=1 // pred_check
      _
    $region31: #{discriminator_forward.1} parent=1 // pred_check_branch
      %81 = sbr.rel (0) target = $region33
    $region32: #{discriminator_forward.1} parent=1 // pred_region
      %83 = dma.done [#allocation4], 50176
    $region33: #{discriminator_forward.1} parent=1 // pred_fallthru
      _
    // Predicated region
    $region34: #{discriminator_forward.1} parent=1 // pred_check
      _
    $region35: #{discriminator_forward.1} parent=1 // pred_check_branch
      %85 = sbr.rel (0) target = $region37
    $region36: #{discriminator_forward.1} parent=1 // pred_region
      %87 = dma.done [#allocation6], 64
    $region37: #{discriminator_forward.1} parent=1 // pred_fallthru
      _
    // Predicated region
    $region38: #{discriminator_forward.1} parent=1 // pred_check
      _
    $region39: #{discriminator_forward.1} parent=1 // pred_check_branch
      %89 = sbr.rel (0) target = $region41
    $region40: #{discriminator_forward.1} parent=1 // pred_region
      %91 = dma.done [#allocation6], 16384
    $region41: #{discriminator_forward.1} parent=1 // pred_fallthru
      _
    // Predicated region
    $region42: #{discriminator_forward.1} parent=1 // pred_check
      _
    $region43: #{discriminator_forward.1} parent=1 // pred_check_branch
      %93 = sbr.rel (0) target = $region45
    $region44: #{discriminator_forward.1} parent=1 // pred_region
      %95 = dma.done [#allocation9], 32
    $region45: #{discriminator_forward.1} parent=1 // pred_fallthru
      _
    // Predicated region
    $region46: #{discriminator_forward.1} parent=1 // pred_check
      _
    $region47: #{discriminator_forward.1} parent=1 // pred_check_branch
      %97 = sbr.rel (0) target = $region49
    $region48: #{discriminator_forward.1} parent=1 // pred_region
      %99 = dma.done [#allocation9], 32
    $region49: #{discriminator_forward.1} parent=1 // pred_fallthru
      _
    %v100 = vld [vmem:[%s0] sm:$0xff]
    %v101 = vld [vmem:[%s0 + $0x8] sm:$0xff]
    %v102 = vld [vmem:[%s0 + $0x10] sm:$0xff]
    %v103 = vld [vmem:[%s0 + $0x18] sm:$0xff]
    %v104 = vld [vmem:[%s0 + $0x20] sm:$0xff]
    %v105 = vld [vmem:[%s0 + $0x28] sm:$0xff]
    %v106 = vld [vmem:[%s0 + $0x30] sm:$0xff]
    %v107 = vld [vmem:[#allocation3] sm:$0xff]
    %v108 = vld [vmem:[#allocation3 + $0x8] sm:$0xff]
    %v109 = vld [vmem:[#allocation3 + $0x10] sm:$0xff]
    %v110 = vld [vmem:[#allocation3 + $0x18] sm:$0xff]
    %v111 = vld [vmem:[#allocation3 + $0x20] sm:$0xff]
    %v112 = vld [vmem:[#allocation3 + $0x28] sm:$0xff]
    %v113 = vld [vmem:[#allocation3 + $0x30] sm:$0xff]
    %v114 = vld [vmem:[#allocation3 + $0x38] sm:$0xff]
    %v115 = vld [vmem:[#allocation3 + $0x40] sm:$0xff]
    %v116 = vld [vmem:[#allocation3 + $0x48] sm:$0xff]
    %v117 = vld [vmem:[#allocation3 + $0x50] sm:$0xff]
    %v118 = vld [vmem:[#allocation3 + $0x58] sm:$0xff]
    %v119 = vld [vmem:[#allocation3 + $0x60] sm:$0xff]
    %v120 = vld [vmem:[#allocation3 + $0x68] sm:$0xff]
    %v121 = vld [vmem:[#allocation3 + $0x70] sm:$0xff]
    %v122 = vld [vmem:[#allocation3 + $0x78] sm:$0xff]
    %v123 = vld [vmem:[#allocation3 + $0x80] sm:$0xff]
    %v124 = vld [vmem:[#allocation3 + $0x88] sm:$0xff]
    %v125 = vld [vmem:[#allocation3 + $0x90] sm:$0xff]
    %v126 = vld [vmem:[#allocation3 + $0x98] sm:$0xff]
    %v127 = vld [vmem:[#allocation3 + $0xa0] sm:$0xff]
    %v128 = vld [vmem:[#allocation3 + $0xa8] sm:$0xff]
    %v129 = vld [vmem:[#allocation3 + $0xb0] sm:$0xff]
    %v130 = vld [vmem:[#allocation3 + $0xb8] sm:$0xff]
    %v131 = vld [vmem:[#allocation3 + $0xc0] sm:$0xff]
    %v132 = vld [vmem:[#allocation3 + $0xc8] sm:$0xff]
    %v133 = vld [vmem:[#allocation3 + $0xd0] sm:$0xff]
    %v134 = vld [vmem:[#allocation3 + $0xd8] sm:$0xff]
    %v135 = vld [vmem:[#allocation3 + $0xe0] sm:$0xff]
    %v136 = vld [vmem:[#allocation3 + $0xe8] sm:$0xff]
    %v137 = vld [vmem:[#allocation3 + $0xf0] sm:$0xff]
    %v138 = vld [vmem:[#allocation3 + $0xf8] sm:$0xff]
    %v139 = vld [vmem:[#allocation3 + $0x100] sm:$0xff]
    %v140 = vld [vmem:[#allocation3 + $0x108] sm:$0xff]
    %v141 = vld [vmem:[#allocation3 + $0x110] sm:$0xff]
    %v142 = vld [vmem:[#allocation3 + $0x118] sm:$0xff]
    %v143 = vld [vmem:[#allocation3 + $0x120] sm:$0xff]
    %v144 = vld [vmem:[#allocation3 + $0x128] sm:$0xff]
    %v145 = vld [vmem:[#allocation3 + $0x130] sm:$0xff]
    %v146 = vld [vmem:[#allocation3 + $0x138] sm:$0xff]
    %v147 = vld [vmem:[#allocation3 + $0x140] sm:$0xff]
    %v148 = vld [vmem:[#allocation3 + $0x148] sm:$0xff]
    %v149 = vld [vmem:[#allocation3 + $0x150] sm:$0xff]
    %v150 = vld [vmem:[#allocation3 + $0x158] sm:$0xff]
    %v151 = vld [vmem:[#allocation3 + $0x160] sm:$0xff]
    %v152 = vld [vmem:[#allocation3 + $0x168] sm:$0xff]
    %v153 = vld [vmem:[#allocation3 + $0x170] sm:$0xff]
    %v154 = vld [vmem:[#allocation3 + $0x178] sm:$0xff]
    %v155 = vld [vmem:[#allocation3 + $0x180] sm:$0xff]
    %v156 = vld [vmem:[#allocation3 + $0x188] sm:$0xff]
    %v157 = vld [vmem:[#allocation3 + $0x190] sm:$0xff]
    %v158 = vld [vmem:[#allocation3 + $0x198] sm:$0xff]
    %v159 = vld [vmem:[#allocation3 + $0x1a0] sm:$0xff]
    %v160 = vld [vmem:[#allocation3 + $0x1a8] sm:$0xff]
    %v161 = vld [vmem:[#allocation3 + $0x1b0] sm:$0xff]
    %v162 = vld [vmem:[#allocation3 + $0x1b8] sm:$0xff]
    %v163 = vld [vmem:[#allocation3 + $0x1c0] sm:$0xff]
    %v164 = vld [vmem:[#allocation3 + $0x1c8] sm:$0xff]
    %v165 = vld [vmem:[#allocation3 + $0x1d0] sm:$0xff]
    %v166 = vld [vmem:[#allocation3 + $0x1d8] sm:$0xff]
    %v167 = vld [vmem:[#allocation3 + $0x1e0] sm:$0xff]
    %v168 = vld [vmem:[#allocation3 + $0x1e8] sm:$0xff]
    %v169 = vld [vmem:[#allocation3 + $0x1f0] sm:$0xff]
    %v170 = vld [vmem:[#allocation3 + $0x1f8] sm:$0xff]
    %v171 = vld [vmem:[#allocation3 + $0x200] sm:$0xff]
    %v172 = vld [vmem:[#allocation3 + $0x208] sm:$0xff]
    %v173 = vld [vmem:[#allocation3 + $0x210] sm:$0xff]
    %v174 = vld [vmem:[#allocation3 + $0x218] sm:$0xff]
    %v175 = vld [vmem:[#allocation3 + $0x220] sm:$0xff]
    %v176 = vld [vmem:[#allocation3 + $0x228] sm:$0xff]
    %v177 = vld [vmem:[#allocation3 + $0x230] sm:$0xff]
    %v178 = vld [vmem:[#allocation3 + $0x238] sm:$0xff]
    %v179 = vld [vmem:[#allocation3 + $0x240] sm:$0xff]
    %v180 = vld [vmem:[#allocation3 + $0x248] sm:$0xff]
    %v181 = vld [vmem:[#allocation3 + $0x250] sm:$0xff]
    %v182 = vld [vmem:[#allocation3 + $0x258] sm:$0xff]
    %v183 = vld [vmem:[#allocation3 + $0x260] sm:$0xff]
    %v184 = vld [vmem:[#allocation3 + $0x268] sm:$0xff]
    %v185 = vld [vmem:[#allocation3 + $0x270] sm:$0xff]
    %v186 = vld [vmem:[#allocation3 + $0x278] sm:$0xff]
    %v187 = vld [vmem:[#allocation3 + $0x280] sm:$0xff]
    %v188 = vld [vmem:[#allocation3 + $0x288] sm:$0xff]
    %v189 = vld [vmem:[#allocation3 + $0x290] sm:$0xff]
    %v190 = vld [vmem:[#allocation3 + $0x298] sm:$0xff]
    %v191 = vld [vmem:[#allocation3 + $0x2a0] sm:$0xff]
    %v192 = vld [vmem:[#allocation3 + $0x2a8] sm:$0xff]
    %v193 = vld [vmem:[#allocation3 + $0x2b0] sm:$0xff]
    %v194 = vld [vmem:[#allocation3 + $0x2b8] sm:$0xff]
    %v195 = vld [vmem:[#allocation3 + $0x2c0] sm:$0xff]
    %v196 = vld [vmem:[#allocation3 + $0x2c8] sm:$0xff]
    %v197 = vld [vmem:[#allocation3 + $0x2d0] sm:$0xff]
    %v198 = vld [vmem:[#allocation3 + $0x2d8] sm:$0xff]
    %v199 = vld [vmem:[#allocation3 + $0x2e0] sm:$0xff]
    %v200 = vld [vmem:[#allocation3 + $0x2e8] sm:$0xff]
    %v201 = vld [vmem:[#allocation3 + $0x2f0] sm:$0xff]
    %v202 = vld [vmem:[#allocation3 + $0x2f8] sm:$0xff]
    %v203 = vld [vmem:[#allocation3 + $0x300] sm:$0xff]
    %v204 = vld [vmem:[#allocation3 + $0x308] sm:$0xff]
    %v205 = vld [vmem:[#allocation3 + $0x310] sm:$0xff]
    %v206 = vld [vmem:[#allocation3 + $0x318] sm:$0xff]
    %v207 = vld [vmem:[#allocation3 + $0x320] sm:$0xff]
    %v208 = vld [vmem:[#allocation3 + $0x328] sm:$0xff]
    %v209 = vld [vmem:[#allocation3 + $0x330] sm:$0xff]
    %v210 = vld [vmem:[#allocation3 + $0x338] sm:$0xff]
    %v211 = vld [vmem:[#allocation3 + $0x340] sm:$0xff]
    %v212 = vld [vmem:[#allocation3 + $0x348] sm:$0xff]
    %v213 = vld [vmem:[#allocation3 + $0x350] sm:$0xff]
    %v214 = vld [vmem:[#allocation3 + $0x358] sm:$0xff]
    %v215 = vld [vmem:[#allocation3 + $0x360] sm:$0xff]
    %v216 = vld [vmem:[#allocation3 + $0x368] sm:$0xff]
    %v217 = vld [vmem:[#allocation3 + $0x370] sm:$0xff]
    %v218 = vld [vmem:[#allocation3 + $0x378] sm:$0xff]
    %v219 = vld [vmem:[#allocation3 + $0x380] sm:$0xff]
    %v220 = vld [vmem:[#allocation3 + $0x388] sm:$0xff]
    %v221 = vld [vmem:[#allocation3 + $0x390] sm:$0xff]
    %v222 = vld [vmem:[#allocation3 + $0x398] sm:$0xff]
    %v223 = vld [vmem:[#allocation3 + $0x3a0] sm:$0xff]
    %v224 = vld [vmem:[#allocation3 + $0x3a8] sm:$0xff]
    %v225 = vld [vmem:[#allocation3 + $0x3b0] sm:$0xff]
    %v226 = vld [vmem:[#allocation3 + $0x3b8] sm:$0xff]
    %v227 = vld [vmem:[#allocation3 + $0x3c0] sm:$0xff]
    %v228 = vld [vmem:[#allocation3 + $0x3c8] sm:$0xff]
    %v229 = vld [vmem:[#allocation3 + $0x3d0] sm:$0xff]
    %v230 = vld [vmem:[#allocation3 + $0x3d8] sm:$0xff]
    %v231 = vld [vmem:[#allocation3 + $0x3e0] sm:$0xff]
    %v232 = vld [vmem:[#allocation3 + $0x3e8] sm:$0xff]
    %v233 = vld [vmem:[#allocation3 + $0x3f0] sm:$0xff]
    %v234 = vld [vmem:[#allocation3 + $0x3f8] sm:$0xff]
    %v235 = vld [vmem:[#allocation3 + $0x400] sm:$0xff]
    %v236 = vld [vmem:[#allocation3 + $0x408] sm:$0xff]
    %v237 = vld [vmem:[#allocation3 + $0x410] sm:$0xff]
    %v238 = vld [vmem:[#allocation3 + $0x418] sm:$0xff]
    %v239 = vld [vmem:[#allocation3 + $0x420] sm:$0xff]
    %v240 = vld [vmem:[#allocation3 + $0x428] sm:$0xff]
    %v241 = vld [vmem:[#allocation3 + $0x430] sm:$0xff]
    %v242 = vld [vmem:[#allocation3 + $0x438] sm:$0xff]
    %v243 = vld [vmem:[#allocation3 + $0x440] sm:$0xff]
    %v244 = vld [vmem:[#allocation3 + $0x448] sm:$0xff]
    %v245 = vld [vmem:[#allocation3 + $0x450] sm:$0xff]
    %v246 = vld [vmem:[#allocation3 + $0x458] sm:$0xff]
    %v247 = vld [vmem:[#allocation3 + $0x460] sm:$0xff]
    %v248 = vld [vmem:[#allocation3 + $0x468] sm:$0xff]
    %v249 = vld [vmem:[#allocation3 + $0x470] sm:$0xff]
    %v250 = vld [vmem:[#allocation3 + $0x478] sm:$0xff]
    %v251 = vld [vmem:[#allocation3 + $0x480] sm:$0xff]
    %v252 = vld [vmem:[#allocation3 + $0x488] sm:$0xff]
    %v253 = vld [vmem:[#allocation3 + $0x490] sm:$0xff]
    %v254 = vld [vmem:[#allocation3 + $0x498] sm:$0xff]
    %v255 = vld [vmem:[#allocation3 + $0x4a0] sm:$0xff]
    %v256 = vld [vmem:[#allocation3 + $0x4a8] sm:$0xff]
    %v257 = vld [vmem:[#allocation3 + $0x4b0] sm:$0xff]
    %v258 = vld [vmem:[#allocation3 + $0x4b8] sm:$0xff]
    %v259 = vld [vmem:[#allocation3 + $0x4c0] sm:$0xff]
    %v260 = vld [vmem:[#allocation3 + $0x4c8] sm:$0xff]
    %v261 = vld [vmem:[#allocation3 + $0x4d0] sm:$0xff]
    %v262 = vld [vmem:[#allocation3 + $0x4d8] sm:$0xff]
    %v263 = vld [vmem:[#allocation3 + $0x4e0] sm:$0xff]
    %v264 = vld [vmem:[#allocation3 + $0x4e8] sm:$0xff]
    %v265 = vld [vmem:[#allocation3 + $0x4f0] sm:$0xff]
    %v266 = vld [vmem:[#allocation3 + $0x4f8] sm:$0xff]
    %v267 = vld [vmem:[#allocation3 + $0x500] sm:$0xff]
    %v268 = vld [vmem:[#allocation3 + $0x508] sm:$0xff]
    %v269 = vld [vmem:[#allocation3 + $0x510] sm:$0xff]
    %v270 = vld [vmem:[#allocation3 + $0x518] sm:$0xff]
    %v271 = vld [vmem:[#allocation3 + $0x520] sm:$0xff]
    %v272 = vld [vmem:[#allocation3 + $0x528] sm:$0xff]
    %v273 = vld [vmem:[#allocation3 + $0x530] sm:$0xff]
    %v274 = vld [vmem:[#allocation3 + $0x538] sm:$0xff]
    %v275 = vld [vmem:[#allocation3 + $0x540] sm:$0xff]
    %v276 = vld [vmem:[#allocation3 + $0x548] sm:$0xff]
    %v277 = vld [vmem:[#allocation3 + $0x550] sm:$0xff]
    %v278 = vld [vmem:[#allocation3 + $0x558] sm:$0xff]
    %v279 = vld [vmem:[#allocation3 + $0x560] sm:$0xff]
    %v280 = vld [vmem:[#allocation3 + $0x568] sm:$0xff]
    %v281 = vld [vmem:[#allocation3 + $0x570] sm:$0xff]
    %v282 = vld [vmem:[#allocation3 + $0x578] sm:$0xff]
    %v283 = vld [vmem:[#allocation3 + $0x580] sm:$0xff]
    %v284 = vld [vmem:[#allocation3 + $0x588] sm:$0xff]
    %v285 = vld [vmem:[#allocation3 + $0x590] sm:$0xff]
    %v286 = vld [vmem:[#allocation3 + $0x598] sm:$0xff]
    %v287 = vld [vmem:[#allocation3 + $0x5a0] sm:$0xff]
    %v288 = vld [vmem:[#allocation3 + $0x5a8] sm:$0xff]
    %v289 = vld [vmem:[#allocation3 + $0x5b0] sm:$0xff]
    %v290 = vld [vmem:[#allocation3 + $0x5b8] sm:$0xff]
    %v291 = vld [vmem:[#allocation3 + $0x5c0] sm:$0xff]
    %v292 = vld [vmem:[#allocation3 + $0x5c8] sm:$0xff]
    %v293 = vld [vmem:[#allocation3 + $0x5d0] sm:$0xff]
    %v294 = vld [vmem:[#allocation3 + $0x5d8] sm:$0xff]
    %v295 = vld [vmem:[#allocation3 + $0x5e0] sm:$0xff]
    %v296 = vld [vmem:[#allocation3 + $0x5e8] sm:$0xff]
    %v297 = vld [vmem:[#allocation3 + $0x5f0] sm:$0xff]
    %v298 = vld [vmem:[#allocation3 + $0x5f8] sm:$0xff]
    %v299 = vld [vmem:[#allocation3 + $0x600] sm:$0xff]
    %v300 = vld [vmem:[#allocation3 + $0x608] sm:$0xff]
    %v301 = vld [vmem:[#allocation3 + $0x610] sm:$0xff]
    %v302 = vld [vmem:[#allocation3 + $0x618] sm:$0xff]
    %v303 = vld [vmem:[#allocation3 + $0x620] sm:$0xff]
    %v304 = vld [vmem:[#allocation3 + $0x628] sm:$0xff]
    %v305 = vld [vmem:[#allocation3 + $0x630] sm:$0xff]
    %v306 = vld [vmem:[#allocation3 + $0x638] sm:$0xff]
    %v307 = vld [vmem:[#allocation3 + $0x640] sm:$0xff]
    %v308 = vld [vmem:[#allocation3 + $0x648] sm:$0xff]
    %v309 = vld [vmem:[#allocation3 + $0x650] sm:$0xff]
    %v310 = vld [vmem:[#allocation3 + $0x658] sm:$0xff]
    %v311 = vld [vmem:[#allocation3 + $0x660] sm:$0xff]
    %v312 = vld [vmem:[#allocation3 + $0x668] sm:$0xff]
    %v313 = vld [vmem:[#allocation3 + $0x670] sm:$0xff]
    %v314 = vld [vmem:[#allocation3 + $0x678] sm:$0xff]
    %v315 = vld [vmem:[#allocation3 + $0x680] sm:$0xff]
    %v316 = vld [vmem:[#allocation3 + $0x688] sm:$0xff]
    %v317 = vld [vmem:[#allocation3 + $0x690] sm:$0xff]
    %v318 = vld [vmem:[#allocation3 + $0x698] sm:$0xff]
    %v319 = vld [vmem:[#allocation3 + $0x6a0] sm:$0xff]
    %v320 = vld [vmem:[#allocation3 + $0x6a8] sm:$0xff]
    %v321 = vld [vmem:[#allocation3 + $0x6b0] sm:$0xff]
    %v322 = vld [vmem:[#allocation3 + $0x6b8] sm:$0xff]
    %v323 = vld [vmem:[#allocation3 + $0x6c0] sm:$0xff]
    %v324 = vld [vmem:[#allocation3 + $0x6c8] sm:$0xff]
    %v325 = vld [vmem:[#allocation3 + $0x6d0] sm:$0xff]
    %v326 = vld [vmem:[#allocation3 + $0x6d8] sm:$0xff]
    %v327 = vld [vmem:[#allocation3 + $0x6e0] sm:$0xff]
    %v328 = vld [vmem:[#allocation3 + $0x6e8] sm:$0xff]
    %v329 = vld [vmem:[#allocation3 + $0x6f0] sm:$0xff]
    %v330 = vld [vmem:[#allocation3 + $0x6f8] sm:$0xff]
    %v331 = vld [vmem:[#allocation3 + $0x700] sm:$0xff]
    %v332 = vld [vmem:[#allocation3 + $0x708] sm:$0xff]
    %v333 = vld [vmem:[#allocation3 + $0x710] sm:$0xff]
    %v334 = vld [vmem:[#allocation3 + $0x718] sm:$0xff]
    %v335 = vld [vmem:[#allocation3 + $0x720] sm:$0xff]
    %v336 = vld [vmem:[#allocation3 + $0x728] sm:$0xff]
    %v337 = vld [vmem:[#allocation3 + $0x730] sm:$0xff]
    %v338 = vld [vmem:[#allocation3 + $0x738] sm:$0xff]
    %v339 = vld [vmem:[#allocation3 + $0x740] sm:$0xff]
    %v340 = vld [vmem:[#allocation3 + $0x748] sm:$0xff]
    %v341 = vld [vmem:[#allocation3 + $0x750] sm:$0xff]
    %v342 = vld [vmem:[#allocation3 + $0x758] sm:$0xff]
    %v343 = vld [vmem:[#allocation3 + $0x760] sm:$0xff]
    %v344 = vld [vmem:[#allocation3 + $0x768] sm:$0xff]
    %v345 = vld [vmem:[#allocation3 + $0x770] sm:$0xff]
    %v346 = vld [vmem:[#allocation3 + $0x778] sm:$0xff]
    %v347 = vld [vmem:[#allocation3 + $0x780] sm:$0xff]
    %v348 = vld [vmem:[#allocation3 + $0x788] sm:$0xff]
    %v349 = vld [vmem:[#allocation3 + $0x790] sm:$0xff]
    %v350 = vld [vmem:[#allocation3 + $0x798] sm:$0xff]
    %v351 = vld [vmem:[#allocation3 + $0x7a0] sm:$0xff]
    %v352 = vld [vmem:[#allocation3 + $0x7a8] sm:$0xff]
    %v353 = vld [vmem:[#allocation3 + $0x7b0] sm:$0xff]
    %v354 = vld [vmem:[#allocation3 + $0x7b8] sm:$0xff]
    %v355 = vld [vmem:[#allocation3 + $0x7c0] sm:$0xff]
    %v356 = vld [vmem:[#allocation3 + $0x7c8] sm:$0xff]
    %v357 = vld [vmem:[#allocation3 + $0x7d0] sm:$0xff]
    %v358 = vld [vmem:[#allocation3 + $0x7d8] sm:$0xff]
    %v359 = vld [vmem:[#allocation3 + $0x7e0] sm:$0xff]
    %v360 = vld [vmem:[#allocation3 + $0x7e8] sm:$0xff]
    %v361 = vld [vmem:[#allocation3 + $0x7f0] sm:$0xff]
    %v362 = vld [vmem:[#allocation3 + $0x7f8] sm:$0xff]
    %v363 = vld [vmem:[#allocation3 + $0x800] sm:$0xff]
    %v364 = vld [vmem:[#allocation3 + $0x808] sm:$0xff]
    %v365 = vld [vmem:[#allocation3 + $0x810] sm:$0xff]
    %v366 = vld [vmem:[#allocation3 + $0x818] sm:$0xff]
    %v367 = vld [vmem:[#allocation3 + $0x820] sm:$0xff]
    %v368 = vld [vmem:[#allocation3 + $0x828] sm:$0xff]
    %v369 = vld [vmem:[#allocation3 + $0x830] sm:$0xff]
    %v370 = vld [vmem:[#allocation3 + $0x838] sm:$0xff]
    %v371 = vld [vmem:[#allocation3 + $0x840] sm:$0xff]
    %v372 = vld [vmem:[#allocation3 + $0x848] sm:$0xff]
    %v373 = vld [vmem:[#allocation3 + $0x850] sm:$0xff]
    %v374 = vld [vmem:[#allocation3 + $0x858] sm:$0xff]
    %v375 = vld [vmem:[#allocation3 + $0x860] sm:$0xff]
    %v376 = vld [vmem:[#allocation3 + $0x868] sm:$0xff]
    %v377 = vld [vmem:[#allocation3 + $0x870] sm:$0xff]
    %v378 = vld [vmem:[#allocation3 + $0x878] sm:$0xff]
    %v379 = vld [vmem:[#allocation3 + $0x880] sm:$0xff]
    %v380 = vld [vmem:[#allocation3 + $0x888] sm:$0xff]
    %v381 = vld [vmem:[#allocation3 + $0x890] sm:$0xff]
    %v382 = vld [vmem:[#allocation3 + $0x898] sm:$0xff]
    %v383 = vld [vmem:[#allocation3 + $0x8a0] sm:$0xff]
    %v384 = vld [vmem:[#allocation3 + $0x8a8] sm:$0xff]
    %v385 = vld [vmem:[#allocation3 + $0x8b0] sm:$0xff]
    %v386 = vld [vmem:[#allocation3 + $0x8b8] sm:$0xff]
    %v387 = vld [vmem:[#allocation3 + $0x8c0] sm:$0xff]
    %v388 = vld [vmem:[#allocation3 + $0x8c8] sm:$0xff]
    %v389 = vld [vmem:[#allocation3 + $0x8d0] sm:$0xff]
    %v390 = vld [vmem:[#allocation3 + $0x8d8] sm:$0xff]
    %v391 = vld [vmem:[#allocation3 + $0x8e0] sm:$0xff]
    %v392 = vld [vmem:[#allocation3 + $0x8e8] sm:$0xff]
    %v393 = vld [vmem:[#allocation3 + $0x8f0] sm:$0xff]
    %v394 = vld [vmem:[#allocation3 + $0x8f8] sm:$0xff]
    %v395 = vld [vmem:[#allocation3 + $0x900] sm:$0xff]
    %v396 = vld [vmem:[#allocation3 + $0x908] sm:$0xff]
    %v397 = vld [vmem:[#allocation3 + $0x910] sm:$0xff]
    %v398 = vld [vmem:[#allocation3 + $0x918] sm:$0xff]
    %v399 = vld [vmem:[#allocation3 + $0x920] sm:$0xff]
    %v400 = vld [vmem:[#allocation3 + $0x928] sm:$0xff]
    %v401 = vld [vmem:[#allocation3 + $0x930] sm:$0xff]
    %v402 = vld [vmem:[#allocation3 + $0x938] sm:$0xff]
    %v403 = vld [vmem:[#allocation3 + $0x940] sm:$0xff]
    %v404 = vld [vmem:[#allocation3 + $0x948] sm:$0xff]
    %v405 = vld [vmem:[#allocation3 + $0x950] sm:$0xff]
    %v406 = vld [vmem:[#allocation3 + $0x958] sm:$0xff]
    %v407 = vld [vmem:[#allocation3 + $0x960] sm:$0xff]
    %v408 = vld [vmem:[#allocation3 + $0x968] sm:$0xff]
    %v409 = vld [vmem:[#allocation3 + $0x970] sm:$0xff]
    %v410 = vld [vmem:[#allocation3 + $0x978] sm:$0xff]
    %v411 = vld [vmem:[#allocation3 + $0x980] sm:$0xff]
    %v412 = vld [vmem:[#allocation3 + $0x988] sm:$0xff]
    %v413 = vld [vmem:[#allocation3 + $0x990] sm:$0xff]
    %v414 = vld [vmem:[#allocation3 + $0x998] sm:$0xff]
    %v415 = vld [vmem:[#allocation3 + $0x9a0] sm:$0xff]
    %v416 = vld [vmem:[#allocation3 + $0x9a8] sm:$0xff]
    %v417 = vld [vmem:[#allocation3 + $0x9b0] sm:$0xff]
    %v418 = vld [vmem:[#allocation3 + $0x9b8] sm:$0xff]
    %v419 = vld [vmem:[#allocation3 + $0x9c0] sm:$0xff]
    %v420 = vld [vmem:[#allocation3 + $0x9c8] sm:$0xff]
    %v421 = vld [vmem:[#allocation3 + $0x9d0] sm:$0xff]
    %v422 = vld [vmem:[#allocation3 + $0x9d8] sm:$0xff]
    %v423 = vld [vmem:[#allocation3 + $0x9e0] sm:$0xff]
    %v424 = vld [vmem:[#allocation3 + $0x9e8] sm:$0xff]
    %v425 = vld [vmem:[#allocation3 + $0x9f0] sm:$0xff]
    %v426 = vld [vmem:[#allocation3 + $0x9f8] sm:$0xff]
    %v427 = vld [vmem:[#allocation3 + $0xa00] sm:$0xff]
    %v428 = vld [vmem:[#allocation3 + $0xa08] sm:$0xff]
    %v429 = vld [vmem:[#allocation3 + $0xa10] sm:$0xff]
    %v430 = vld [vmem:[#allocation3 + $0xa18] sm:$0xff]
    %v431 = vld [vmem:[#allocation3 + $0xa20] sm:$0xff]
    %v432 = vld [vmem:[#allocation3 + $0xa28] sm:$0xff]
    %v433 = vld [vmem:[#allocation3 + $0xa30] sm:$0xff]
    %v434 = vld [vmem:[#allocation3 + $0xa38] sm:$0xff]
    %v435 = vld [vmem:[#allocation3 + $0xa40] sm:$0xff]
    %v436 = vld [vmem:[#allocation3 + $0xa48] sm:$0xff]
    %v437 = vld [vmem:[#allocation3 + $0xa50] sm:$0xff]
    %v438 = vld [vmem:[#allocation3 + $0xa58] sm:$0xff]
    %v439 = vld [vmem:[#allocation3 + $0xa60] sm:$0xff]
    %v440 = vld [vmem:[#allocation3 + $0xa68] sm:$0xff]
    %v441 = vld [vmem:[#allocation3 + $0xa70] sm:$0xff]
    %v442 = vld [vmem:[#allocation3 + $0xa78] sm:$0xff]
    %v443 = vld [vmem:[#allocation3 + $0xa80] sm:$0xff]
    %v444 = vld [vmem:[#allocation3 + $0xa88] sm:$0xff]
    %v445 = vld [vmem:[#allocation3 + $0xa90] sm:$0xff]
    %v446 = vld [vmem:[#allocation3 + $0xa98] sm:$0xff]
    %v447 = vld [vmem:[#allocation3 + $0xaa0] sm:$0xff]
    %v448 = vld [vmem:[#allocation3 + $0xaa8] sm:$0xff]
    %v449 = vld [vmem:[#allocation3 + $0xab0] sm:$0xff]
    %v450 = vld [vmem:[#allocation3 + $0xab8] sm:$0xff]
    %v451 = vld [vmem:[#allocation3 + $0xac0] sm:$0xff]
    %v452 = vld [vmem:[#allocation3 + $0xac8] sm:$0xff]
    %v453 = vld [vmem:[#allocation3 + $0xad0] sm:$0xff]
    %v454 = vld [vmem:[#allocation3 + $0xad8] sm:$0xff]
    %v455 = vld [vmem:[#allocation3 + $0xae0] sm:$0xff]
    %v456 = vld [vmem:[#allocation3 + $0xae8] sm:$0xff]
    %v457 = vld [vmem:[#allocation3 + $0xaf0] sm:$0xff]
    %v458 = vld [vmem:[#allocation3 + $0xaf8] sm:$0xff]
    %v459 = vld [vmem:[#allocation3 + $0xb00] sm:$0xff]
    %v460 = vld [vmem:[#allocation3 + $0xb08] sm:$0xff]
    %v461 = vld [vmem:[#allocation3 + $0xb10] sm:$0xff]
    %v462 = vld [vmem:[#allocation3 + $0xb18] sm:$0xff]
    %v463 = vld [vmem:[#allocation3 + $0xb20] sm:$0xff]
    %v464 = vld [vmem:[#allocation3 + $0xb28] sm:$0xff]
    %v465 = vld [vmem:[#allocation3 + $0xb30] sm:$0xff]
    %v466 = vld [vmem:[#allocation3 + $0xb38] sm:$0xff]
    %v467 = vld [vmem:[#allocation3 + $0xb40] sm:$0xff]
    %v468 = vld [vmem:[#allocation3 + $0xb48] sm:$0xff]
    %v469 = vld [vmem:[#allocation3 + $0xb50] sm:$0xff]
    %v470 = vld [vmem:[#allocation3 + $0xb58] sm:$0xff]
    %v471 = vld [vmem:[#allocation3 + $0xb60] sm:$0xff]
    %v472 = vld [vmem:[#allocation3 + $0xb68] sm:$0xff]
    %v473 = vld [vmem:[#allocation3 + $0xb70] sm:$0xff]
    %v474 = vld [vmem:[#allocation3 + $0xb78] sm:$0xff]
    %v475 = vld [vmem:[#allocation3 + $0xb80] sm:$0xff]
    %v476 = vld [vmem:[#allocation3 + $0xb88] sm:$0xff]
    %v477 = vld [vmem:[#allocation3 + $0xb90] sm:$0xff]
    %v478 = vld [vmem:[#allocation3 + $0xb98] sm:$0xff]
    %v479 = vld [vmem:[#allocation3 + $0xba0] sm:$0xff]
    %v480 = vld [vmem:[#allocation3 + $0xba8] sm:$0xff]
    %v481 = vld [vmem:[#allocation3 + $0xbb0] sm:$0xff]
    %v482 = vld [vmem:[#allocation3 + $0xbb8] sm:$0xff]
    %v483 = vld [vmem:[#allocation3 + $0xbc0] sm:$0xff]
    %v484 = vld [vmem:[#allocation3 + $0xbc8] sm:$0xff]
    %v485 = vld [vmem:[#allocation3 + $0xbd0] sm:$0xff]
    %v486 = vld [vmem:[#allocation3 + $0xbd8] sm:$0xff]
    %v487 = vld [vmem:[#allocation3 + $0xbe0] sm:$0xff]
    %v488 = vld [vmem:[#allocation3 + $0xbe8] sm:$0xff]
    %v489 = vld [vmem:[#allocation3 + $0xbf0] sm:$0xff]
    %v490 = vld [vmem:[#allocation3 + $0xbf8] sm:$0xff]
    %v491 = vld [vmem:[#allocation3 + $0xc00] sm:$0xff]
    %v492 = vld [vmem:[#allocation3 + $0xc08] sm:$0xff]
    %v493 = vld [vmem:[#allocation3 + $0xc10] sm:$0xff]
    %v494 = vld [vmem:[#allocation3 + $0xc18] sm:$0xff]
    %v495 = vld [vmem:[#allocation3 + $0xc20] sm:$0xff]
    %v496 = vld [vmem:[#allocation3 + $0xc28] sm:$0xff]
    %v497 = vld [vmem:[#allocation3 + $0xc30] sm:$0xff]
    %v498 = vld [vmem:[#allocation3 + $0xc38] sm:$0xff]
    %v499 = vld [vmem:[#allocation5] sm:$0xf]
    %v501 = vperm.slane %v499, 0
    %v502 = vperm.slane %v499, 1
    %v503 = vperm.slane %v499, 2
    %v504 = vperm.slane %v499, 3
    %vm509 = vcmask 130048
    %v511 = vsel %vm509, %v106, 0
    %513 = vmatpush.msra.mxu0 %v167
    %514 = vmatpush.msra.mxu0 %v163
    %515 = vmatpush.msra.mxu0 %v159
    %516 = vmatpush.msra.mxu0 %v155
    %517 = vmatpush.msra.mxu0 %v151
    %518 = vmatpush.msra.mxu0 %v147
    %519 = vmatpush.msra.mxu0 %v143
    %520 = vmatpush.msra.mxu0 %v139
    %521 = vmatpush.msra.mxu0 %v135
    %522 = vmatpush.msra.mxu0 %v131
    %523 = vmatpush.msra.mxu0 %v127
    %524 = vmatpush.msra.mxu0 %v123
    %525 = vmatpush.msra.mxu0 %v119
    %526 = vmatpush.msra.mxu0 %v115
    %527 = vmatpush.msra.mxu0 %v111
    %528 = vmatpush.msra.mxu0 %v107
    %529 = vmatmul.f32.gmra.mxu0 %v100
    %v530 = vpop.f32.mrf.mxu0
    %v531 = vadd.f32 %v501, %v530
    %532 = vdwg.mxu0
    %533 = vmatpush.msra.mxu0 %v231
    %534 = vmatpush.msra.mxu0 %v227
    %535 = vmatpush.msra.mxu0 %v223
    %536 = vmatpush.msra.mxu0 %v219
    %537 = vmatpush.msra.mxu0 %v215
    %538 = vmatpush.msra.mxu0 %v211
    %539 = vmatpush.msra.mxu0 %v207
    %540 = vmatpush.msra.mxu0 %v203
    %541 = vmatpush.msra.mxu0 %v199
    %542 = vmatpush.msra.mxu0 %v195
    %543 = vmatpush.msra.mxu0 %v191
    %544 = vmatpush.msra.mxu0 %v187
    %545 = vmatpush.msra.mxu0 %v183
    %546 = vmatpush.msra.mxu0 %v179
    %547 = vmatpush.msra.mxu0 %v175
    %548 = vmatpush.msra.mxu0 %v171
    %549 = vmatmul.f32.gmra.mxu0 %v101
    %v550 = vpop.f32.mrf.mxu0
    %v551 = vadd.f32 %v531, %v550
    %552 = vdwg.mxu0
    %553 = vmatpush.msra.mxu0 %v295
    %554 = vmatpush.msra.mxu0 %v291
    %555 = vmatpush.msra.mxu0 %v287
    %556 = vmatpush.msra.mxu0 %v283
    %557 = vmatpush.msra.mxu0 %v279
    %558 = vmatpush.msra.mxu0 %v275
    %559 = vmatpush.msra.mxu0 %v271
    %560 = vmatpush.msra.mxu0 %v267
    %561 = vmatpush.msra.mxu0 %v263
    %562 = vmatpush.msra.mxu0 %v259
    %563 = vmatpush.msra.mxu0 %v255
    %564 = vmatpush.msra.mxu0 %v251
    %565 = vmatpush.msra.mxu0 %v247
    %566 = vmatpush.msra.mxu0 %v243
    %567 = vmatpush.msra.mxu0 %v239
    %568 = vmatpush.msra.mxu0 %v235
    %569 = vmatmul.f32.gmra.mxu0 %v102
    %v570 = vpop.f32.mrf.mxu0
    %v571 = vadd.f32 %v551, %v570
    %572 = vdwg.mxu0
    %573 = vmatpush.msra.mxu0 %v359
    %574 = vmatpush.msra.mxu0 %v355
    %575 = vmatpush.msra.mxu0 %v351
    %576 = vmatpush.msra.mxu0 %v347
    %577 = vmatpush.msra.mxu0 %v343
    %578 = vmatpush.msra.mxu0 %v339
    %579 = vmatpush.msra.mxu0 %v335
    %580 = vmatpush.msra.mxu0 %v331
    %581 = vmatpush.msra.mxu0 %v327
    %582 = vmatpush.msra.mxu0 %v323
    %583 = vmatpush.msra.mxu0 %v319
    %584 = vmatpush.msra.mxu0 %v315
    %585 = vmatpush.msra.mxu0 %v311
    %586 = vmatpush.msra.mxu0 %v307
    %587 = vmatpush.msra.mxu0 %v303
    %588 = vmatpush.msra.mxu0 %v299
    %589 = vmatmul.f32.gmra.mxu0 %v103
    %v590 = vpop.f32.mrf.mxu0
    %v591 = vadd.f32 %v571, %v590
    %592 = vdwg.mxu0
    %593 = vmatpush.msra.mxu0 %v423
    %594 = vmatpush.msra.mxu0 %v419
    %595 = vmatpush.msra.mxu0 %v415
    %596 = vmatpush.msra.mxu0 %v411
    %597 = vmatpush.msra.mxu0 %v407
    %598 = vmatpush.msra.mxu0 %v403
    %599 = vmatpush.msra.mxu0 %v399
    %600 = vmatpush.msra.mxu0 %v395
    %601 = vmatpush.msra.mxu0 %v391
    %602 = vmatpush.msra.mxu0 %v387
    %603 = vmatpush.msra.mxu0 %v383
    %604 = vmatpush.msra.mxu0 %v379
    %605 = vmatpush.msra.mxu0 %v375
    %606 = vmatpush.msra.mxu0 %v371
    %607 = vmatpush.msra.mxu0 %v367
    %608 = vmatpush.msra.mxu0 %v363
    %609 = vmatmul.f32.gmra.mxu0 %v104
    %v610 = vpop.f32.mrf.mxu0
    %v611 = vadd.f32 %v591, %v610
    %612 = vdwg.mxu0
    %613 = vmatpush.msra.mxu0 %v487
    %614 = vmatpush.msra.mxu0 %v483
    %615 = vmatpush.msra.mxu0 %v479
    %616 = vmatpush.msra.mxu0 %v475
    %617 = vmatpush.msra.mxu0 %v471
    %618 = vmatpush.msra.mxu0 %v467
    %619 = vmatpush.msra.mxu0 %v463
    %620 = vmatpush.msra.mxu0 %v459
    %621 = vmatpush.msra.mxu0 %v455
    %622 = vmatpush.msra.mxu0 %v451
    %623 = vmatpush.msra.mxu0 %v447
    %624 = vmatpush.msra.mxu0 %v443
    %625 = vmatpush.msra.mxu0 %v439
    %626 = vmatpush.msra.mxu0 %v435
    %627 = vmatpush.msra.mxu0 %v431
    %628 = vmatpush.msra.mxu0 %v427
    %629 = vmatmul.f32.gmra.mxu0 %v105
    %v630 = vpop.f32.mrf.mxu0
    %v631 = vadd.f32 %v611, %v630
    %632 = vdwg.mxu0
    %633 = vmatpush.msra.mxu0 0.0
    %634 = vmatpush.msra.mxu0 0.0
    %635 = vmatpush.msra.mxu0 0.0
    %636 = vmatpush.msra.mxu0 0.0
    %637 = vmatpush.msra.mxu0 0.0
    %638 = vmatpush.msra.mxu0 0.0
    %639 = vmatpush.msra.mxu0 0.0
    %640 = vmatpush.msra.mxu0 0.0
    %641 = vmatpush.msra.mxu0 0.0
    %642 = vmatpush.msra.mxu0 0.0
    %643 = vmatpush.msra.mxu0 0.0
    %644 = vmatpush.msra.mxu0 0.0
    %645 = vmatpush.msra.mxu0 0.0
    %646 = vmatpush.msra.mxu0 0.0
    %647 = vmatpush.msra.mxu0 %v495
    %648 = vmatpush.msra.mxu0 %v491
    %649 = vmatmul.f32.gmra.mxu0 %v511
    %v650 = vpop.f32.mrf.mxu0
    %v651 = vadd.f32 %v631, %v650
    %652 = vdwg.mxu0
    %653 = vmatpush.msra.mxu0 %v168
    %654 = vmatpush.msra.mxu0 %v164
    %655 = vmatpush.msra.mxu0 %v160
    %656 = vmatpush.msra.mxu0 %v156
    %657 = vmatpush.msra.mxu0 %v152
    %658 = vmatpush.msra.mxu0 %v148
    %659 = vmatpush.msra.mxu0 %v144
    %660 = vmatpush.msra.mxu0 %v140
    %661 = vmatpush.msra.mxu0 %v136
    %662 = vmatpush.msra.mxu0 %v132
    %663 = vmatpush.msra.mxu0 %v128
    %664 = vmatpush.msra.mxu0 %v124
    %665 = vmatpush.msra.mxu0 %v120
    %666 = vmatpush.msra.mxu0 %v116
    %667 = vmatpush.msra.mxu0 %v112
    %668 = vmatpush.msra.mxu0 %v108
    %669 = vmatmul.f32.gmra.mxu0 %v100
    %v670 = vpop.f32.mrf.mxu0
    %v671 = vadd.f32 %v502, %v670
    %672 = vdwg.mxu0
    %673 = vmatpush.msra.mxu0 %v232
    %674 = vmatpush.msra.mxu0 %v228
    %675 = vmatpush.msra.mxu0 %v224
    %676 = vmatpush.msra.mxu0 %v220
    %677 = vmatpush.msra.mxu0 %v216
    %678 = vmatpush.msra.mxu0 %v212
    %679 = vmatpush.msra.mxu0 %v208
    %680 = vmatpush.msra.mxu0 %v204
    %681 = vmatpush.msra.mxu0 %v200
    %682 = vmatpush.msra.mxu0 %v196
    %683 = vmatpush.msra.mxu0 %v192
    %684 = vmatpush.msra.mxu0 %v188
    %685 = vmatpush.msra.mxu0 %v184
    %686 = vmatpush.msra.mxu0 %v180
    %687 = vmatpush.msra.mxu0 %v176
    %688 = vmatpush.msra.mxu0 %v172
    %689 = vmatmul.f32.gmra.mxu0 %v101
    %v690 = vpop.f32.mrf.mxu0
    %v691 = vadd.f32 %v671, %v690
    %692 = vdwg.mxu0
    %693 = vmatpush.msra.mxu0 %v296
    %694 = vmatpush.msra.mxu0 %v292
    %695 = vmatpush.msra.mxu0 %v288
    %696 = vmatpush.msra.mxu0 %v284
    %697 = vmatpush.msra.mxu0 %v280
    %698 = vmatpush.msra.mxu0 %v276
    %699 = vmatpush.msra.mxu0 %v272
    %700 = vmatpush.msra.mxu0 %v268
    %701 = vmatpush.msra.mxu0 %v264
    %702 = vmatpush.msra.mxu0 %v260
    %703 = vmatpush.msra.mxu0 %v256
    %704 = vmatpush.msra.mxu0 %v252
    %705 = vmatpush.msra.mxu0 %v248
    %706 = vmatpush.msra.mxu0 %v244
    %707 = vmatpush.msra.mxu0 %v240
    %708 = vmatpush.msra.mxu0 %v236
    %709 = vmatmul.f32.gmra.mxu0 %v102
    %v710 = vpop.f32.mrf.mxu0
    %v711 = vadd.f32 %v691, %v710
    %712 = vdwg.mxu0
    %713 = vmatpush.msra.mxu0 %v360
    %714 = vmatpush.msra.mxu0 %v356
    %715 = vmatpush.msra.mxu0 %v352
    %716 = vmatpush.msra.mxu0 %v348
    %717 = vmatpush.msra.mxu0 %v344
    %718 = vmatpush.msra.mxu0 %v340
    %719 = vmatpush.msra.mxu0 %v336
    %720 = vmatpush.msra.mxu0 %v332
    %721 = vmatpush.msra.mxu0 %v328
    %722 = vmatpush.msra.mxu0 %v324
    %723 = vmatpush.msra.mxu0 %v320
    %724 = vmatpush.msra.mxu0 %v316
    %725 = vmatpush.msra.mxu0 %v312
    %726 = vmatpush.msra.mxu0 %v308
    %727 = vmatpush.msra.mxu0 %v304
    %728 = vmatpush.msra.mxu0 %v300
    %729 = vmatmul.f32.gmra.mxu0 %v103
    %v730 = vpop.f32.mrf.mxu0
    %v731 = vadd.f32 %v711, %v730
    %732 = vdwg.mxu0
    %733 = vmatpush.msra.mxu0 %v424
    %734 = vmatpush.msra.mxu0 %v420
    %735 = vmatpush.msra.mxu0 %v416
    %736 = vmatpush.msra.mxu0 %v412
    %737 = vmatpush.msra.mxu0 %v408
    %738 = vmatpush.msra.mxu0 %v404
    %739 = vmatpush.msra.mxu0 %v400
    %740 = vmatpush.msra.mxu0 %v396
    %741 = vmatpush.msra.mxu0 %v392
    %742 = vmatpush.msra.mxu0 %v388
    %743 = vmatpush.msra.mxu0 %v384
    %744 = vmatpush.msra.mxu0 %v380
    %745 = vmatpush.msra.mxu0 %v376
    %746 = vmatpush.msra.mxu0 %v372
    %747 = vmatpush.msra.mxu0 %v368
    %748 = vmatpush.msra.mxu0 %v364
    %749 = vmatmul.f32.gmra.mxu0 %v104
    %v750 = vpop.f32.mrf.mxu0
    %v751 = vadd.f32 %v731, %v750
    %752 = vdwg.mxu0
    %753 = vmatpush.msra.mxu0 %v488
    %754 = vmatpush.msra.mxu0 %v484
    %755 = vmatpush.msra.mxu0 %v480
    %756 = vmatpush.msra.mxu0 %v476
    %757 = vmatpush.msra.mxu0 %v472
    %758 = vmatpush.msra.mxu0 %v468
    %759 = vmatpush.msra.mxu0 %v464
    %760 = vmatpush.msra.mxu0 %v460
    %761 = vmatpush.msra.mxu0 %v456
    %762 = vmatpush.msra.mxu0 %v452
    %763 = vmatpush.msra.mxu0 %v448
    %764 = vmatpush.msra.mxu0 %v444
    %765 = vmatpush.msra.mxu0 %v440
    %766 = vmatpush.msra.mxu0 %v436
    %767 = vmatpush.msra.mxu0 %v432
    %768 = vmatpush.msra.mxu0 %v428
    %769 = vmatmul.f32.gmra.mxu0 %v105
    %v770 = vpop.f32.mrf.mxu0
    %v771 = vadd.f32 %v751, %v770
    %772 = vdwg.mxu0
    %773 = vmatpush.msra.mxu0 0.0
    %774 = vmatpush.msra.mxu0 0.0
    %775 = vmatpush.msra.mxu0 0.0
    %776 = vmatpush.msra.mxu0 0.0
    %777 = vmatpush.msra.mxu0 0.0
    %778 = vmatpush.msra.mxu0 0.0
    %779 = vmatpush.msra.mxu0 0.0
    %780 = vmatpush.msra.mxu0 0.0
    %781 = vmatpush.msra.mxu0 0.0
    %782 = vmatpush.msra.mxu0 0.0
    %783 = vmatpush.msra.mxu0 0.0
    %784 = vmatpush.msra.mxu0 0.0
    %785 = vmatpush.msra.mxu0 0.0
    %786 = vmatpush.msra.mxu0 0.0
    %787 = vmatpush.msra.mxu0 %v496
    %788 = vmatpush.msra.mxu0 %v492
    %789 = vmatmul.f32.gmra.mxu0 %v511
    %v790 = vpop.f32.mrf.mxu0
    %v791 = vadd.f32 %v771, %v790
    %792 = vdwg.mxu0
    %793 = vmatpush.msra.mxu0 %v169
    %794 = vmatpush.msra.mxu0 %v165
    %795 = vmatpush.msra.mxu0 %v161
    %796 = vmatpush.msra.mxu0 %v157
    %797 = vmatpush.msra.mxu0 %v153
    %798 = vmatpush.msra.mxu0 %v149
    %799 = vmatpush.msra.mxu0 %v145
    %800 = vmatpush.msra.mxu0 %v141
    %801 = vmatpush.msra.mxu0 %v137
    %802 = vmatpush.msra.mxu0 %v133
    %803 = vmatpush.msra.mxu0 %v129
    %804 = vmatpush.msra.mxu0 %v125
    %805 = vmatpush.msra.mxu0 %v121
    %806 = vmatpush.msra.mxu0 %v117
    %807 = vmatpush.msra.mxu0 %v113
    %808 = vmatpush.msra.mxu0 %v109
    %809 = vmatmul.f32.gmra.mxu0 %v100
    %v810 = vpop.f32.mrf.mxu0
    %v811 = vadd.f32 %v503, %v810
    %812 = vdwg.mxu0
    %813 = vmatpush.msra.mxu0 %v233
    %814 = vmatpush.msra.mxu0 %v229
    %815 = vmatpush.msra.mxu0 %v225
    %816 = vmatpush.msra.mxu0 %v221
    %817 = vmatpush.msra.mxu0 %v217
    %818 = vmatpush.msra.mxu0 %v213
    %819 = vmatpush.msra.mxu0 %v209
    %820 = vmatpush.msra.mxu0 %v205
    %821 = vmatpush.msra.mxu0 %v201
    %822 = vmatpush.msra.mxu0 %v197
    %823 = vmatpush.msra.mxu0 %v193
    %824 = vmatpush.msra.mxu0 %v189
    %825 = vmatpush.msra.mxu0 %v185
    %826 = vmatpush.msra.mxu0 %v181
    %827 = vmatpush.msra.mxu0 %v177
    %828 = vmatpush.msra.mxu0 %v173
    %829 = vmatmul.f32.gmra.mxu0 %v101
    %v830 = vpop.f32.mrf.mxu0
    %v831 = vadd.f32 %v811, %v830
    %832 = vdwg.mxu0
    %833 = vmatpush.msra.mxu0 %v297
    %834 = vmatpush.msra.mxu0 %v293
    %835 = vmatpush.msra.mxu0 %v289
    %836 = vmatpush.msra.mxu0 %v285
    %837 = vmatpush.msra.mxu0 %v281
    %838 = vmatpush.msra.mxu0 %v277
    %839 = vmatpush.msra.mxu0 %v273
    %840 = vmatpush.msra.mxu0 %v269
    %841 = vmatpush.msra.mxu0 %v265
    %842 = vmatpush.msra.mxu0 %v261
    %843 = vmatpush.msra.mxu0 %v257
    %844 = vmatpush.msra.mxu0 %v253
    %845 = vmatpush.msra.mxu0 %v249
    %846 = vmatpush.msra.mxu0 %v245
    %847 = vmatpush.msra.mxu0 %v241
    %848 = vmatpush.msra.mxu0 %v237
    %849 = vmatmul.f32.gmra.mxu0 %v102
    %v850 = vpop.f32.mrf.mxu0
    %v851 = vadd.f32 %v831, %v850
    %852 = vdwg.mxu0
    %853 = vmatpush.msra.mxu0 %v361
    %854 = vmatpush.msra.mxu0 %v357
    %855 = vmatpush.msra.mxu0 %v353
    %856 = vmatpush.msra.mxu0 %v349
    %857 = vmatpush.msra.mxu0 %v345
    %858 = vmatpush.msra.mxu0 %v341
    %859 = vmatpush.msra.mxu0 %v337
    %860 = vmatpush.msra.mxu0 %v333
    %861 = vmatpush.msra.mxu0 %v329
    %862 = vmatpush.msra.mxu0 %v325
    %863 = vmatpush.msra.mxu0 %v321
    %864 = vmatpush.msra.mxu0 %v317
    %865 = vmatpush.msra.mxu0 %v313
    %866 = vmatpush.msra.mxu0 %v309
    %867 = vmatpush.msra.mxu0 %v305
    %868 = vmatpush.msra.mxu0 %v301
    %869 = vmatmul.f32.gmra.mxu0 %v103
    %v870 = vpop.f32.mrf.mxu0
    %v871 = vadd.f32 %v851, %v870
    %872 = vdwg.mxu0
    %873 = vmatpush.msra.mxu0 %v425
    %874 = vmatpush.msra.mxu0 %v421
    %875 = vmatpush.msra.mxu0 %v417
    %876 = vmatpush.msra.mxu0 %v413
    %877 = vmatpush.msra.mxu0 %v409
    %878 = vmatpush.msra.mxu0 %v405
    %879 = vmatpush.msra.mxu0 %v401
    %880 = vmatpush.msra.mxu0 %v397
    %881 = vmatpush.msra.mxu0 %v393
    %882 = vmatpush.msra.mxu0 %v389
    %883 = vmatpush.msra.mxu0 %v385
    %884 = vmatpush.msra.mxu0 %v381
    %885 = vmatpush.msra.mxu0 %v377
    %886 = vmatpush.msra.mxu0 %v373
    %887 = vmatpush.msra.mxu0 %v369
    %888 = vmatpush.msra.mxu0 %v365
    %889 = vmatmul.f32.gmra.mxu0 %v104
    %v890 = vpop.f32.mrf.mxu0
    %v891 = vadd.f32 %v871, %v890
    %892 = vdwg.mxu0
    %893 = vmatpush.msra.mxu0 %v489
    %894 = vmatpush.msra.mxu0 %v485
    %895 = vmatpush.msra.mxu0 %v481
    %896 = vmatpush.msra.mxu0 %v477
    %897 = vmatpush.msra.mxu0 %v473
    %898 = vmatpush.msra.mxu0 %v469
    %899 = vmatpush.msra.mxu0 %v465
    %900 = vmatpush.msra.mxu0 %v461
    %901 = vmatpush.msra.mxu0 %v457
    %902 = vmatpush.msra.mxu0 %v453
    %903 = vmatpush.msra.mxu0 %v449
    %904 = vmatpush.msra.mxu0 %v445
    %905 = vmatpush.msra.mxu0 %v441
    %906 = vmatpush.msra.mxu0 %v437
    %907 = vmatpush.msra.mxu0 %v433
    %908 = vmatpush.msra.mxu0 %v429
    %909 = vmatmul.f32.gmra.mxu0 %v105
    %v910 = vpop.f32.mrf.mxu0
    %v911 = vadd.f32 %v891, %v910
    %912 = vdwg.mxu0
    %913 = vmatpush.msra.mxu0 0.0
    %914 = vmatpush.msra.mxu0 0.0
    %915 = vmatpush.msra.mxu0 0.0
    %916 = vmatpush.msra.mxu0 0.0
    %917 = vmatpush.msra.mxu0 0.0
    %918 = vmatpush.msra.mxu0 0.0
    %919 = vmatpush.msra.mxu0 0.0
    %920 = vmatpush.msra.mxu0 0.0
    %921 = vmatpush.msra.mxu0 0.0
    %922 = vmatpush.msra.mxu0 0.0
    %923 = vmatpush.msra.mxu0 0.0
    %924 = vmatpush.msra.mxu0 0.0
    %925 = vmatpush.msra.mxu0 0.0
    %926 = vmatpush.msra.mxu0 0.0
    %927 = vmatpush.msra.mxu0 %v497
    %928 = vmatpush.msra.mxu0 %v493
    %929 = vmatmul.f32.gmra.mxu0 %v511
    %v930 = vpop.f32.mrf.mxu0
    %v931 = vadd.f32 %v911, %v930
    %932 = vdwg.mxu0
    %933 = vmatpush.msra.mxu0 %v170
    %934 = vmatpush.msra.mxu0 %v166
    %935 = vmatpush.msra.mxu0 %v162
    %936 = vmatpush.msra.mxu0 %v158
    %937 = vmatpush.msra.mxu0 %v154
    %938 = vmatpush.msra.mxu0 %v150
    %939 = vmatpush.msra.mxu0 %v146
    %940 = vmatpush.msra.mxu0 %v142
    %941 = vmatpush.msra.mxu0 %v138
    %942 = vmatpush.msra.mxu0 %v134
    %943 = vmatpush.msra.mxu0 %v130
    %944 = vmatpush.msra.mxu0 %v126
    %945 = vmatpush.msra.mxu0 %v122
    %946 = vmatpush.msra.mxu0 %v118
    %947 = vmatpush.msra.mxu0 %v114
    %948 = vmatpush.msra.mxu0 %v110
    %949 = vmatmul.f32.gmra.mxu0 %v100
    %v950 = vpop.f32.mrf.mxu0
    %v951 = vadd.f32 %v504, %v950
    %952 = vdwg.mxu0
    %953 = vmatpush.msra.mxu0 %v234
    %954 = vmatpush.msra.mxu0 %v230
    %955 = vmatpush.msra.mxu0 %v226
    %956 = vmatpush.msra.mxu0 %v222
    %957 = vmatpush.msra.mxu0 %v218
    %958 = vmatpush.msra.mxu0 %v214
    %959 = vmatpush.msra.mxu0 %v210
    %960 = vmatpush.msra.mxu0 %v206
    %961 = vmatpush.msra.mxu0 %v202
    %962 = vmatpush.msra.mxu0 %v198
    %963 = vmatpush.msra.mxu0 %v194
    %964 = vmatpush.msra.mxu0 %v190
    %965 = vmatpush.msra.mxu0 %v186
    %966 = vmatpush.msra.mxu0 %v182
    %967 = vmatpush.msra.mxu0 %v178
    %968 = vmatpush.msra.mxu0 %v174
    %969 = vmatmul.f32.gmra.mxu0 %v101
    %v970 = vpop.f32.mrf.mxu0
    %v971 = vadd.f32 %v951, %v970
    %972 = vdwg.mxu0
    %973 = vmatpush.msra.mxu0 %v298
    %974 = vmatpush.msra.mxu0 %v294
    %975 = vmatpush.msra.mxu0 %v290
    %976 = vmatpush.msra.mxu0 %v286
    %977 = vmatpush.msra.mxu0 %v282
    %978 = vmatpush.msra.mxu0 %v278
    %979 = vmatpush.msra.mxu0 %v274
    %980 = vmatpush.msra.mxu0 %v270
    %981 = vmatpush.msra.mxu0 %v266
    %982 = vmatpush.msra.mxu0 %v262
    %983 = vmatpush.msra.mxu0 %v258
    %984 = vmatpush.msra.mxu0 %v254
    %985 = vmatpush.msra.mxu0 %v250
    %986 = vmatpush.msra.mxu0 %v246
    %987 = vmatpush.msra.mxu0 %v242
    %988 = vmatpush.msra.mxu0 %v238
    %989 = vmatmul.f32.gmra.mxu0 %v102
    %v990 = vpop.f32.mrf.mxu0
    %v991 = vadd.f32 %v971, %v990
    %992 = vdwg.mxu0
    %993 = vmatpush.msra.mxu0 %v362
    %994 = vmatpush.msra.mxu0 %v358
    %995 = vmatpush.msra.mxu0 %v354
    %996 = vmatpush.msra.mxu0 %v350
    %997 = vmatpush.msra.mxu0 %v346
    %998 = vmatpush.msra.mxu0 %v342
    %999 = vmatpush.msra.mxu0 %v338
    %1000 = vmatpush.msra.mxu0 %v334
    %1001 = vmatpush.msra.mxu0 %v330
    %1002 = vmatpush.msra.mxu0 %v326
    %1003 = vmatpush.msra.mxu0 %v322
    %1004 = vmatpush.msra.mxu0 %v318
    %1005 = vmatpush.msra.mxu0 %v314
    %1006 = vmatpush.msra.mxu0 %v310
    %1007 = vmatpush.msra.mxu0 %v306
    %1008 = vmatpush.msra.mxu0 %v302
    %1009 = vmatmul.f32.gmra.mxu0 %v103
    %v1010 = vpop.f32.mrf.mxu0
    %v1011 = vadd.f32 %v991, %v1010
    %1012 = vdwg.mxu0
    %1013 = vmatpush.msra.mxu0 %v426
    %1014 = vmatpush.msra.mxu0 %v422
    %1015 = vmatpush.msra.mxu0 %v418
    %1016 = vmatpush.msra.mxu0 %v414
    %1017 = vmatpush.msra.mxu0 %v410
    %1018 = vmatpush.msra.mxu0 %v406
    %1019 = vmatpush.msra.mxu0 %v402
    %1020 = vmatpush.msra.mxu0 %v398
    %1021 = vmatpush.msra.mxu0 %v394
    %1022 = vmatpush.msra.mxu0 %v390
    %1023 = vmatpush.msra.mxu0 %v386
    %1024 = vmatpush.msra.mxu0 %v382
    %1025 = vmatpush.msra.mxu0 %v378
    %1026 = vmatpush.msra.mxu0 %v374
    %1027 = vmatpush.msra.mxu0 %v370
    %1028 = vmatpush.msra.mxu0 %v366
    %1029 = vmatmul.f32.gmra.mxu0 %v104
    %v1030 = vpop.f32.mrf.mxu0
    %v1031 = vadd.f32 %v1011, %v1030
    %1032 = vdwg.mxu0
    %1033 = vmatpush.msra.mxu0 %v490
    %1034 = vmatpush.msra.mxu0 %v486
    %1035 = vmatpush.msra.mxu0 %v482
    %1036 = vmatpush.msra.mxu0 %v478
    %1037 = vmatpush.msra.mxu0 %v474
    %1038 = vmatpush.msra.mxu0 %v470
    %1039 = vmatpush.msra.mxu0 %v466
    %1040 = vmatpush.msra.mxu0 %v462
    %1041 = vmatpush.msra.mxu0 %v458
    %1042 = vmatpush.msra.mxu0 %v454
    %1043 = vmatpush.msra.mxu0 %v450
    %1044 = vmatpush.msra.mxu0 %v446
    %1045 = vmatpush.msra.mxu0 %v442
    %1046 = vmatpush.msra.mxu0 %v438
    %1047 = vmatpush.msra.mxu0 %v434
    %1048 = vmatpush.msra.mxu0 %v430
    %1049 = vmatmul.f32.gmra.mxu0 %v105
    %v1050 = vpop.f32.mrf.mxu0
    %v1051 = vadd.f32 %v1031, %v1050
    %1052 = vdwg.mxu0
    %1053 = vmatpush.msra.mxu0 0.0
    %1054 = vmatpush.msra.mxu0 0.0
    %1055 = vmatpush.msra.mxu0 0.0
    %1056 = vmatpush.msra.mxu0 0.0
    %1057 = vmatpush.msra.mxu0 0.0
    %1058 = vmatpush.msra.mxu0 0.0
    %1059 = vmatpush.msra.mxu0 0.0
    %1060 = vmatpush.msra.mxu0 0.0
    %1061 = vmatpush.msra.mxu0 0.0
    %1062 = vmatpush.msra.mxu0 0.0
    %1063 = vmatpush.msra.mxu0 0.0
    %1064 = vmatpush.msra.mxu0 0.0
    %1065 = vmatpush.msra.mxu0 0.0
    %1066 = vmatpush.msra.mxu0 0.0
    %1067 = vmatpush.msra.mxu0 %v498
    %1068 = vmatpush.msra.mxu0 %v494
    %1069 = vmatmul.f32.gmra.mxu0 %v511
    %v1070 = vpop.f32.mrf.mxu0
    %v1071 = vadd.f32 %v1051, %v1070
    %1072 = vdwg.mxu0
    %vm1073 = vcmp.gt.f32.partialorder %v651, 0.0
    %vm1074 = vcmp.gt.f32.partialorder %v791, 0.0
    %vm1075 = vcmp.gt.f32.partialorder %v931, 0.0
    %vm1076 = vcmp.gt.f32.partialorder %v1071, 0.0
    %v1077 = vmul.f32 %v651, 0.2
    %v1078 = vmul.f32 %v791, 0.2
    %v1079 = vmul.f32 %v931, 0.2
    %v1080 = vmul.f32 %v1071, 0.2
    %v1081 = vsel %vm1073, %v651, %v1077
    %v1082 = vsel %vm1074, %v791, %v1078
    %v1083 = vsel %vm1075, %v931, %v1079
    %v1084 = vsel %vm1076, %v1071, %v1080
    %v1085 = vld [vmem:[#allocation7] sm:$0xff]
    %v1086 = vld [vmem:[#allocation7 + $0x8] sm:$0xff]
    %v1087 = vld [vmem:[#allocation7 + $0x10] sm:$0xff]
    %v1088 = vld [vmem:[#allocation7 + $0x18] sm:$0xff]
    %v1089 = vld [vmem:[#allocation7 + $0x20] sm:$0xff]
    %v1090 = vld [vmem:[#allocation7 + $0x28] sm:$0xff]
    %v1091 = vld [vmem:[#allocation7 + $0x30] sm:$0xff]
    %v1092 = vld [vmem:[#allocation7 + $0x38] sm:$0xff]
    %v1093 = vld [vmem:[#allocation7 + $0x40] sm:$0xff]
    %v1094 = vld [vmem:[#allocation7 + $0x48] sm:$0xff]
    %v1095 = vld [vmem:[#allocation7 + $0x50] sm:$0xff]
    %v1096 = vld [vmem:[#allocation7 + $0x58] sm:$0xff]
    %v1097 = vld [vmem:[#allocation7 + $0x60] sm:$0xff]
    %v1098 = vld [vmem:[#allocation7 + $0x68] sm:$0xff]
    %v1099 = vld [vmem:[#allocation7 + $0x70] sm:$0xff]
    %v1100 = vld [vmem:[#allocation7 + $0x78] sm:$0xff]
    %v1101 = vld [vmem:[#allocation7 + $0x80] sm:$0xff]
    %v1102 = vld [vmem:[#allocation7 + $0x88] sm:$0xff]
    %v1103 = vld [vmem:[#allocation7 + $0x90] sm:$0xff]
    %v1104 = vld [vmem:[#allocation7 + $0x98] sm:$0xff]
    %v1105 = vld [vmem:[#allocation7 + $0xa0] sm:$0xff]
    %v1106 = vld [vmem:[#allocation7 + $0xa8] sm:$0xff]
    %v1107 = vld [vmem:[#allocation7 + $0xb0] sm:$0xff]
    %v1108 = vld [vmem:[#allocation7 + $0xb8] sm:$0xff]
    %v1109 = vld [vmem:[#allocation7 + $0xc0] sm:$0xff]
    %v1110 = vld [vmem:[#allocation7 + $0xc8] sm:$0xff]
    %v1111 = vld [vmem:[#allocation7 + $0xd0] sm:$0xff]
    %v1112 = vld [vmem:[#allocation7 + $0xd8] sm:$0xff]
    %v1113 = vld [vmem:[#allocation7 + $0xe0] sm:$0xff]
    %v1114 = vld [vmem:[#allocation7 + $0xe8] sm:$0xff]
    %v1115 = vld [vmem:[#allocation7 + $0xf0] sm:$0xff]
    %v1116 = vld [vmem:[#allocation7 + $0xf8] sm:$0xff]
    %v1117 = vld [vmem:[#allocation7 + $0x100] sm:$0xff]
    %v1118 = vld [vmem:[#allocation7 + $0x108] sm:$0xff]
    %v1119 = vld [vmem:[#allocation7 + $0x110] sm:$0xff]
    %v1120 = vld [vmem:[#allocation7 + $0x118] sm:$0xff]
    %v1121 = vld [vmem:[#allocation7 + $0x120] sm:$0xff]
    %v1122 = vld [vmem:[#allocation7 + $0x128] sm:$0xff]
    %v1123 = vld [vmem:[#allocation7 + $0x130] sm:$0xff]
    %v1124 = vld [vmem:[#allocation7 + $0x138] sm:$0xff]
    %v1125 = vld [vmem:[#allocation7 + $0x140] sm:$0xff]
    %v1126 = vld [vmem:[#allocation7 + $0x148] sm:$0xff]
    %v1127 = vld [vmem:[#allocation7 + $0x150] sm:$0xff]
    %v1128 = vld [vmem:[#allocation7 + $0x158] sm:$0xff]
    %v1129 = vld [vmem:[#allocation7 + $0x160] sm:$0xff]
    %v1130 = vld [vmem:[#allocation7 + $0x168] sm:$0xff]
    %v1131 = vld [vmem:[#allocation7 + $0x170] sm:$0xff]
    %v1132 = vld [vmem:[#allocation7 + $0x178] sm:$0xff]
    %v1133 = vld [vmem:[#allocation7 + $0x180] sm:$0xff]
    %v1134 = vld [vmem:[#allocation7 + $0x188] sm:$0xff]
    %v1135 = vld [vmem:[#allocation7 + $0x190] sm:$0xff]
    %v1136 = vld [vmem:[#allocation7 + $0x198] sm:$0xff]
    %v1137 = vld [vmem:[#allocation7 + $0x1a0] sm:$0xff]
    %v1138 = vld [vmem:[#allocation7 + $0x1a8] sm:$0xff]
    %v1139 = vld [vmem:[#allocation7 + $0x1b0] sm:$0xff]
    %v1140 = vld [vmem:[#allocation7 + $0x1b8] sm:$0xff]
    %v1141 = vld [vmem:[#allocation7 + $0x1c0] sm:$0xff]
    %v1142 = vld [vmem:[#allocation7 + $0x1c8] sm:$0xff]
    %v1143 = vld [vmem:[#allocation7 + $0x1d0] sm:$0xff]
    %v1144 = vld [vmem:[#allocation7 + $0x1d8] sm:$0xff]
    %v1145 = vld [vmem:[#allocation7 + $0x1e0] sm:$0xff]
    %v1146 = vld [vmem:[#allocation7 + $0x1e8] sm:$0xff]
    %v1147 = vld [vmem:[#allocation7 + $0x1f0] sm:$0xff]
    %v1148 = vld [vmem:[#allocation7 + $0x1f8] sm:$0xff]
    %v1149 = vld [vmem:[#allocation7 + $0x200] sm:$0xff]
    %v1150 = vld [vmem:[#allocation7 + $0x208] sm:$0xff]
    %v1151 = vld [vmem:[#allocation7 + $0x210] sm:$0xff]
    %v1152 = vld [vmem:[#allocation7 + $0x218] sm:$0xff]
    %v1153 = vld [vmem:[#allocation7 + $0x220] sm:$0xff]
    %v1154 = vld [vmem:[#allocation7 + $0x228] sm:$0xff]
    %v1155 = vld [vmem:[#allocation7 + $0x230] sm:$0xff]
    %v1156 = vld [vmem:[#allocation7 + $0x238] sm:$0xff]
    %v1157 = vld [vmem:[#allocation7 + $0x240] sm:$0xff]
    %v1158 = vld [vmem:[#allocation7 + $0x248] sm:$0xff]
    %v1159 = vld [vmem:[#allocation7 + $0x250] sm:$0xff]
    %v1160 = vld [vmem:[#allocation7 + $0x258] sm:$0xff]
    %v1161 = vld [vmem:[#allocation7 + $0x260] sm:$0xff]
    %v1162 = vld [vmem:[#allocation7 + $0x268] sm:$0xff]
    %v1163 = vld [vmem:[#allocation7 + $0x270] sm:$0xff]
    %v1164 = vld [vmem:[#allocation7 + $0x278] sm:$0xff]
    %v1165 = vld [vmem:[#allocation7 + $0x280] sm:$0xff]
    %v1166 = vld [vmem:[#allocation7 + $0x288] sm:$0xff]
    %v1167 = vld [vmem:[#allocation7 + $0x290] sm:$0xff]
    %v1168 = vld [vmem:[#allocation7 + $0x298] sm:$0xff]
    %v1169 = vld [vmem:[#allocation7 + $0x2a0] sm:$0xff]
    %v1170 = vld [vmem:[#allocation7 + $0x2a8] sm:$0xff]
    %v1171 = vld [vmem:[#allocation7 + $0x2b0] sm:$0xff]
    %v1172 = vld [vmem:[#allocation7 + $0x2b8] sm:$0xff]
    %v1173 = vld [vmem:[#allocation7 + $0x2c0] sm:$0xff]
    %v1174 = vld [vmem:[#allocation7 + $0x2c8] sm:$0xff]
    %v1175 = vld [vmem:[#allocation7 + $0x2d0] sm:$0xff]
    %v1176 = vld [vmem:[#allocation7 + $0x2d8] sm:$0xff]
    %v1177 = vld [vmem:[#allocation7 + $0x2e0] sm:$0xff]
    %v1178 = vld [vmem:[#allocation7 + $0x2e8] sm:$0xff]
    %v1179 = vld [vmem:[#allocation7 + $0x2f0] sm:$0xff]
    %v1180 = vld [vmem:[#allocation7 + $0x2f8] sm:$0xff]
    %v1181 = vld [vmem:[#allocation7 + $0x300] sm:$0xff]
    %v1182 = vld [vmem:[#allocation7 + $0x308] sm:$0xff]
    %v1183 = vld [vmem:[#allocation7 + $0x310] sm:$0xff]
    %v1184 = vld [vmem:[#allocation7 + $0x318] sm:$0xff]
    %v1185 = vld [vmem:[#allocation7 + $0x320] sm:$0xff]
    %v1186 = vld [vmem:[#allocation7 + $0x328] sm:$0xff]
    %v1187 = vld [vmem:[#allocation7 + $0x330] sm:$0xff]
    %v1188 = vld [vmem:[#allocation7 + $0x338] sm:$0xff]
    %v1189 = vld [vmem:[#allocation7 + $0x340] sm:$0xff]
    %v1190 = vld [vmem:[#allocation7 + $0x348] sm:$0xff]
    %v1191 = vld [vmem:[#allocation7 + $0x350] sm:$0xff]
    %v1192 = vld [vmem:[#allocation7 + $0x358] sm:$0xff]
    %v1193 = vld [vmem:[#allocation7 + $0x360] sm:$0xff]
    %v1194 = vld [vmem:[#allocation7 + $0x368] sm:$0xff]
    %v1195 = vld [vmem:[#allocation7 + $0x370] sm:$0xff]
    %v1196 = vld [vmem:[#allocation7 + $0x378] sm:$0xff]
    %v1197 = vld [vmem:[#allocation7 + $0x380] sm:$0xff]
    %v1198 = vld [vmem:[#allocation7 + $0x388] sm:$0xff]
    %v1199 = vld [vmem:[#allocation7 + $0x390] sm:$0xff]
    %v1200 = vld [vmem:[#allocation7 + $0x398] sm:$0xff]
    %v1201 = vld [vmem:[#allocation7 + $0x3a0] sm:$0xff]
    %v1202 = vld [vmem:[#allocation7 + $0x3a8] sm:$0xff]
    %v1203 = vld [vmem:[#allocation7 + $0x3b0] sm:$0xff]
    %v1204 = vld [vmem:[#allocation7 + $0x3b8] sm:$0xff]
    %v1205 = vld [vmem:[#allocation7 + $0x3c0] sm:$0xff]
    %v1206 = vld [vmem:[#allocation7 + $0x3c8] sm:$0xff]
    %v1207 = vld [vmem:[#allocation7 + $0x3d0] sm:$0xff]
    %v1208 = vld [vmem:[#allocation7 + $0x3d8] sm:$0xff]
    %v1209 = vld [vmem:[#allocation7 + $0x3e0] sm:$0xff]
    %v1210 = vld [vmem:[#allocation7 + $0x3e8] sm:$0xff]
    %v1211 = vld [vmem:[#allocation7 + $0x3f0] sm:$0xff]
    %v1212 = vld [vmem:[#allocation7 + $0x3f8] sm:$0xff]
    %v1213 = vld [vmem:[#allocation8] sm:$0x3]
    %v1215 = vperm.slane %v1213, 0
    %v1216 = vperm.slane %v1213, 1
    %1219 = vmatpush.msra.mxu0 %v1115
    %1220 = vmatpush.msra.mxu0 %v1113
    %1221 = vmatpush.msra.mxu0 %v1111
    %1222 = vmatpush.msra.mxu0 %v1109
    %1223 = vmatpush.msra.mxu0 %v1107
    %1224 = vmatpush.msra.mxu0 %v1105
    %1225 = vmatpush.msra.mxu0 %v1103
    %1226 = vmatpush.msra.mxu0 %v1101
    %1227 = vmatpush.msra.mxu0 %v1099
    %1228 = vmatpush.msra.mxu0 %v1097
    %1229 = vmatpush.msra.mxu0 %v1095
    %1230 = vmatpush.msra.mxu0 %v1093
    %1231 = vmatpush.msra.mxu0 %v1091
    %1232 = vmatpush.msra.mxu0 %v1089
    %1233 = vmatpush.msra.mxu0 %v1087
    %1234 = vmatpush.msra.mxu0 %v1085
    %1235 = vmatmul.f32.gmra.mxu0 %v1081
    %v1236 = vpop.f32.mrf.mxu0
    %v1237 = vadd.f32 %v1215, %v1236
    %1238 = vdwg.mxu0
    %1239 = vmatpush.msra.mxu0 %v1147
    %1240 = vmatpush.msra.mxu0 %v1145
    %1241 = vmatpush.msra.mxu0 %v1143
    %1242 = vmatpush.msra.mxu0 %v1141
    %1243 = vmatpush.msra.mxu0 %v1139
    %1244 = vmatpush.msra.mxu0 %v1137
    %1245 = vmatpush.msra.mxu0 %v1135
    %1246 = vmatpush.msra.mxu0 %v1133
    %1247 = vmatpush.msra.mxu0 %v1131
    %1248 = vmatpush.msra.mxu0 %v1129
    %1249 = vmatpush.msra.mxu0 %v1127
    %1250 = vmatpush.msra.mxu0 %v1125
    %1251 = vmatpush.msra.mxu0 %v1123
    %1252 = vmatpush.msra.mxu0 %v1121
    %1253 = vmatpush.msra.mxu0 %v1119
    %1254 = vmatpush.msra.mxu0 %v1117
    %1255 = vmatmul.f32.gmra.mxu0 %v1082
    %v1256 = vpop.f32.mrf.mxu0
    %v1257 = vadd.f32 %v1237, %v1256
    %1258 = vdwg.mxu0
    %1259 = vmatpush.msra.mxu0 %v1179
    %1260 = vmatpush.msra.mxu0 %v1177
    %1261 = vmatpush.msra.mxu0 %v1175
    %1262 = vmatpush.msra.mxu0 %v1173
    %1263 = vmatpush.msra.mxu0 %v1171
    %1264 = vmatpush.msra.mxu0 %v1169
    %1265 = vmatpush.msra.mxu0 %v1167
    %1266 = vmatpush.msra.mxu0 %v1165
    %1267 = vmatpush.msra.mxu0 %v1163
    %1268 = vmatpush.msra.mxu0 %v1161
    %1269 = vmatpush.msra.mxu0 %v1159
    %1270 = vmatpush.msra.mxu0 %v1157
    %1271 = vmatpush.msra.mxu0 %v1155
    %1272 = vmatpush.msra.mxu0 %v1153
    %1273 = vmatpush.msra.mxu0 %v1151
    %1274 = vmatpush.msra.mxu0 %v1149
    %1275 = vmatmul.f32.gmra.mxu0 %v1083
    %v1276 = vpop.f32.mrf.mxu0
    %v1277 = vadd.f32 %v1257, %v1276
    %1278 = vdwg.mxu0
    %1279 = vmatpush.msra.mxu0 %v1211
    %1280 = vmatpush.msra.mxu0 %v1209
    %1281 = vmatpush.msra.mxu0 %v1207
    %1282 = vmatpush.msra.mxu0 %v1205
    %1283 = vmatpush.msra.mxu0 %v1203
    %1284 = vmatpush.msra.mxu0 %v1201
    %1285 = vmatpush.msra.mxu0 %v1199
    %1286 = vmatpush.msra.mxu0 %v1197
    %1287 = vmatpush.msra.mxu0 %v1195
    %1288 = vmatpush.msra.mxu0 %v1193
    %1289 = vmatpush.msra.mxu0 %v1191
    %1290 = vmatpush.msra.mxu0 %v1189
    %1291 = vmatpush.msra.mxu0 %v1187
    %1292 = vmatpush.msra.mxu0 %v1185
    %1293 = vmatpush.msra.mxu0 %v1183
    %1294 = vmatpush.msra.mxu0 %v1181
    %1295 = vmatmul.f32.gmra.mxu0 %v1084
    %v1296 = vpop.f32.mrf.mxu0
    %v1297 = vadd.f32 %v1277, %v1296
    %1298 = vdwg.mxu0
    %1299 = vmatpush.msra.mxu0 %v1116
    %1300 = vmatpush.msra.mxu0 %v1114
    %1301 = vmatpush.msra.mxu0 %v1112
    %1302 = vmatpush.msra.mxu0 %v1110
    %1303 = vmatpush.msra.mxu0 %v1108
    %1304 = vmatpush.msra.mxu0 %v1106
    %1305 = vmatpush.msra.mxu0 %v1104
    %1306 = vmatpush.msra.mxu0 %v1102
    %1307 = vmatpush.msra.mxu0 %v1100
    %1308 = vmatpush.msra.mxu0 %v1098
    %1309 = vmatpush.msra.mxu0 %v1096
    %1310 = vmatpush.msra.mxu0 %v1094
    %1311 = vmatpush.msra.mxu0 %v1092
    %1312 = vmatpush.msra.mxu0 %v1090
    %1313 = vmatpush.msra.mxu0 %v1088
    %1314 = vmatpush.msra.mxu0 %v1086
    %1315 = vmatmul.f32.gmra.mxu0 %v1081
    %v1316 = vpop.f32.mrf.mxu0
    %v1317 = vadd.f32 %v1216, %v1316
    %1318 = vdwg.mxu0
    %1319 = vmatpush.msra.mxu0 %v1148
    %1320 = vmatpush.msra.mxu0 %v1146
    %1321 = vmatpush.msra.mxu0 %v1144
    %1322 = vmatpush.msra.mxu0 %v1142
    %1323 = vmatpush.msra.mxu0 %v1140
    %1324 = vmatpush.msra.mxu0 %v1138
    %1325 = vmatpush.msra.mxu0 %v1136
    %1326 = vmatpush.msra.mxu0 %v1134
    %1327 = vmatpush.msra.mxu0 %v1132
    %1328 = vmatpush.msra.mxu0 %v1130
    %1329 = vmatpush.msra.mxu0 %v1128
    %1330 = vmatpush.msra.mxu0 %v1126
    %1331 = vmatpush.msra.mxu0 %v1124
    %1332 = vmatpush.msra.mxu0 %v1122
    %1333 = vmatpush.msra.mxu0 %v1120
    %1334 = vmatpush.msra.mxu0 %v1118
    %1335 = vmatmul.f32.gmra.mxu0 %v1082
    %v1336 = vpop.f32.mrf.mxu0
    %v1337 = vadd.f32 %v1317, %v1336
    %1338 = vdwg.mxu0
    %1339 = vmatpush.msra.mxu0 %v1180
    %1340 = vmatpush.msra.mxu0 %v1178
    %1341 = vmatpush.msra.mxu0 %v1176
    %1342 = vmatpush.msra.mxu0 %v1174
    %1343 = vmatpush.msra.mxu0 %v1172
    %1344 = vmatpush.msra.mxu0 %v1170
    %1345 = vmatpush.msra.mxu0 %v1168
    %1346 = vmatpush.msra.mxu0 %v1166
    %1347 = vmatpush.msra.mxu0 %v1164
    %1348 = vmatpush.msra.mxu0 %v1162
    %1349 = vmatpush.msra.mxu0 %v1160
    %1350 = vmatpush.msra.mxu0 %v1158
    %1351 = vmatpush.msra.mxu0 %v1156
    %1352 = vmatpush.msra.mxu0 %v1154
    %1353 = vmatpush.msra.mxu0 %v1152
    %1354 = vmatpush.msra.mxu0 %v1150
    %1355 = vmatmul.f32.gmra.mxu0 %v1083
    %v1356 = vpop.f32.mrf.mxu0
    %v1357 = vadd.f32 %v1337, %v1356
    %1358 = vdwg.mxu0
    %1359 = vmatpush.msra.mxu0 %v1212
    %1360 = vmatpush.msra.mxu0 %v1210
    %1361 = vmatpush.msra.mxu0 %v1208
    %1362 = vmatpush.msra.mxu0 %v1206
    %1363 = vmatpush.msra.mxu0 %v1204
    %1364 = vmatpush.msra.mxu0 %v1202
    %1365 = vmatpush.msra.mxu0 %v1200
    %1366 = vmatpush.msra.mxu0 %v1198
    %1367 = vmatpush.msra.mxu0 %v1196
    %1368 = vmatpush.msra.mxu0 %v1194
    %1369 = vmatpush.msra.mxu0 %v1192
    %1370 = vmatpush.msra.mxu0 %v1190
    %1371 = vmatpush.msra.mxu0 %v1188
    %1372 = vmatpush.msra.mxu0 %v1186
    %1373 = vmatpush.msra.mxu0 %v1184
    %1374 = vmatpush.msra.mxu0 %v1182
    %1375 = vmatmul.f32.gmra.mxu0 %v1084
    %v1376 = vpop.f32.mrf.mxu0
    %v1377 = vadd.f32 %v1357, %v1376
    %1378 = vdwg.mxu0
    %vm1379 = vcmp.gt.f32.partialorder %v1297, 0.0
    %vm1380 = vcmp.gt.f32.partialorder %v1377, 0.0
    %v1381 = vmul.f32 %v1297, 0.2
    %v1382 = vmul.f32 %v1377, 0.2
    %v1383 = vsel %vm1379, %v1297, %v1381
    %v1384 = vsel %vm1380, %v1377, %v1382
    %v1385 = vld [vmem:[#allocation10] sm:$0x3]
    %v1387 = vperm.slane %v1385, 0
    %v1388 = vperm.slane %v1385, 1
    %v1391 = vmul.f32 %v1383, %v1387
    %v1392 = vmul.f32 %v1384, %v1388
    %v1393 = vadd.f32 %v1391, %v1392
    %1394 = vadd.xlane.f32.xlu0 %v1393
    %v1395 = vpop.xlane.xlu0 %1394
    %v1396 = vld [vmem:[#allocation2] sm:$0x1]
    %v1398 = vperm.slane %v1396, 0
    %v1400 = vadd.f32 %v1395, %v1398
    %v1401 = vsub.f32 0.0, %v1400
    %v1402 = vmul.f32 %v1401, 1.442695
    %v1403 = vpow.pop %v1402
    %v1404 = vadd.f32 %v1403, 1.0
    %v1405 = vrcp.pop %v1404
    %v1406 = vmul.f32 %v1404, %v1405
    %v1407 = vsub.f32 1.0, %v1406
    %v1408 = vmul.f32 %v1405, %v1407
    %v1409 = vadd.f32 %v1405, %v1408
    %vm1410 = vweird.f32 %v1404
    %vm1411 = vweird.f32 %v1405
    %vm1412 = vmor %vm1410, %vm1411
    %v1413 = vsel %vm1412, %v1405, %v1409
    %v1414 = vand.u32 2147483647, %v1404
    %vm1415 = vcmp.eq.f32.partialorder %v1414, 8.507059e+37
    %v1416 = vand.u32 %v1404, 2147483648
    %v1417 = vor.u32 1.1754944e-38, %v1416
    %v1418 = vsel %vm1415, %v1417, %v1413
    %v1419 = vmul.f32 1.0, %v1418
    %vm1420 = vcmask 7168
    %1421 = vst.msk [vmem:[%s7] sm:$0xff] %vm1420, %v1419
    // Predicated region
    $region50: #{discriminator_forward.1} parent=1 // pred_check
      _
    $region51: #{discriminator_forward.1} parent=1 // pred_check_branch
      %1423 = sbr.rel (0) target = $region53
    $region52: #{discriminator_forward.1} parent=1 // pred_region
      _
    $region53: #{discriminator_forward.1} parent=1 // pred_fallthru
      _
    // Predicated region
    $region54: #{discriminator_forward.1} parent=1 // pred_check
      _
    $region55: #{discriminator_forward.1} parent=1 // pred_check_branch
      %1425 = sbr.rel (0) target = $region57
    $region56: #{discriminator_forward.1} parent=1 // pred_region
      _
    $region57: #{discriminator_forward.1} parent=1 // pred_fallthru
      _
    %1426 = vsyncpa [#allocation4], 1
    %1427 = vsyncpa [#allocation6], 1
    %1428 = vsyncpa [#allocation9], 1

</llo_original>
